<compile_context>
chip_gen: v7x
topology: tpu7x:2x2x1
jax: 0.10.0
libtpu: 0.0.40
codegen_flags: <defaults>
</compile_context>

<pallas_src>
import functools

import jax
import jax.numpy as jnp
from jax.experimental import pallas as pl
from jax.experimental.pallas import tpu as pltpu


_LANE = 128
_MARGIN = 128          # lane-aligned halo on each side of the grouped flat grid
_LANE_BUDGET = 16384   # max lanes (flattened batch*spatial) per grid step


def _round_up(x, m):
    return (x + m - 1) // m * m


def _mish(x):
    # x * tanh(softplus(x)); tanh(softplus(x)) == w/(w+2) with w = e*(e+2),
    # e = exp(x). Clamping exp's argument at 20 mirrors F.mish's softplus
    # threshold (w/(w+2) is 1.0 to fp32 precision there anyway).
    e = jnp.exp(jnp.minimum(x, 20.0))
    w = e * (e + 2.0)
    return x * (w * pl.reciprocal(w + 2.0, approx=True))


def _feature_fusion_kernel(
    x_ref, mask_ref, w1_ref, b1_ref, w2_ref, b2_ref, w3_ref, b3_ref,   # inputs
    out_ref,                                                            # output
    hold_buf, step_buf, patch_buf,                                      # scratch
    *, K, pad, Wp, Wgrp, margin):
    """conv1+Mish -> conv2+Mish -> conv3 + residual for one batch group.

    Activations are (channels on sublanes, flattened zero-padded grids of all
    images in the group concatenated on lanes). Conv taps are static
    lane-offset window slices of halo-extended buffers; each conv is a single
    MXU matmul against an im2col patch built in VMEM. Interior output pixels
    never read across image boundaries or into the halos; everything else is
    masked to zero (matching PyTorch's zero padding semantics).
    """
    f8 = w1_ref.shape[0]
    cin = x_ref.shape[1]

    # Static lane offsets of the K*K taps on a flattened (Hp, Wp) padded grid.
    taps = [(kh - pad) * Wp + (kw - pad) for kh in range(K) for kw in range(K)]

    # Valid-pixel mask (zero on each image's padding border / lane-rounding
    # tail), hoisted once.
    interior = jnp.broadcast_to(mask_ref[...], (f8, Wgrp)) != 0.0

    # Only the halo strips are never overwritten; keep them at zero (4 vreg
    # stores). The interior [margin, margin+Wgrp) is fully rewritten below.
    zeros_halo = jnp.zeros((f8, margin), jnp.float32)
    hold_buf[:, 0:margin] = zeros_halo
    hold_buf[:, margin + Wgrp:margin + Wgrp + margin] = zeros_halo
    step_buf[:, 0:margin] = zeros_halo
    step_buf[:, margin + Wgrp:margin + Wgrp + margin] = zeros_halo

    def conv(window, w_ref, c):
        """acc[f, q] = sum_{t,ci} W[f, t*c+ci] * window_t[ci, q] -> (F8, Wgrp) f32."""
        for t, d in enumerate(taps):
            patch_buf[t * c:(t + 1) * c, :] = window(d)
        return jnp.dot(w_ref[...], patch_buf[0:K * K * c, :],
                       preferred_element_type=jnp.float32)

    def x_window(d):
        return x_ref[0, :, margin + d:margin + d + Wgrp]

    def hold_window(d):
        return hold_buf[:, margin + d:margin + d + Wgrp]

    def step_window(d):
        return step_buf[:, margin + d:margin + d + Wgrp]

    # conv1 + Mish -> hold (kept on the padded flat grid in VMEM)
    hold = _mish(jnp.where(interior,
                           conv(x_window, w1_ref, cin) + b1_ref[...], 0.0))
    hold_buf[:, margin:margin + Wgrp] = hold

    # conv2 + Mish -> step
    step = _mish(jnp.where(interior,
                           conv(hold_window, w2_ref, f8) + b2_ref[...], 0.0))
    step_buf[:, margin:margin + Wgrp] = step

    # conv3 + residual(hold)
    acc3 = conv(step_window, w3_ref, f8)
    out = jnp.where(interior, acc3 + b3_ref[...], 0.0) + hold
    out_ref[...] = out.astype(out_ref.dtype).reshape(1, f8, Wgrp)


def init_feature_fusion_params(key, in_chan, filters, kernel_size):
    """Deterministic synthetic params. Weight layout: (KH, KW, Cin, Cout)."""
    ks = jax.random.split(key, 6)

    def conv_init(kw_, kb_, cin, cout):
        fan_in = cin * kernel_size * kernel_size
        bound = 1.0 / jnp.sqrt(fan_in)
        w = jax.random.uniform(kw_, (kernel_size, kernel_size, cin, cout),
                               jnp.float32, -bound, bound)
        b = jax.random.uniform(kb_, (cout,), jnp.float32, -bound, bound)
        return w, b

    w1, b1 = conv_init(ks[0], ks[1], in_chan, filters)
    w2, b2 = conv_init(ks[2], ks[3], filters, filters)
    w3, b3 = conv_init(ks[4], ks[5], filters, filters)
    return dict(w1=w1, b1=b1, w2=w2, b2=b2, w3=w3, b3=b3)


def feature_fusion_forward(params, x_nchw, padding):
    """Matches FeatureFusion.forward; input/output are NCHW (PyTorch convention)."""
    w1, b1 = params["w1"], params["b1"]
    w2, b2 = params["w2"], params["b2"]
    w3, b3 = params["w3"], params["b3"]

    N, Cin, H, W = x_nchw.shape
    K = w1.shape[0]
    F = w1.shape[-1]
    if 2 * padding != K - 1:
        raise ValueError("FeatureFusion residual add requires 'same' convs "
                         "(2*padding == kernel_size - 1).")

    Hp, Wp = H + 2 * padding, W + 2 * padding
    L = Hp * Wp                       # flattened padded grid length per image
    Lr = _round_up(L, _LANE)          # lane-rounded per-image segment
    Cin8 = _round_up(Cin, 8)          # sublane-aligned channel counts
    F8 = _round_up(F, 8)

    max_d = padding * Wp + padding    # largest |tap lane-offset|
    assert max_d <= _MARGIN, "kernel/padding too large for the fixed lane halo"

    # Fold as many images as fit the lane budget into one grid step.
    # TODO(synk): also tile the flattened spatial axis (with halo) for very
    # large images, to bound patch_buf VMEM and feed both v7x TensorCores.
    NB = max(1, min(N, _LANE_BUDGET // Lr))
    G = (N + NB - 1) // NB
    Npad = G * NB
    Wgrp = NB * Lr                    # lanes per grid step (multiple of 128)
    Wtot = _MARGIN + Wgrp + _MARGIN   # halo-extended width (multiple of 128)

    # ---- XLA-side prep (tiny): pad channels + spatial once, flatten, group.
    xp = jnp.pad(x_nchw.astype(jnp.float32),
                 ((0, Npad - N), (0, Cin8 - Cin),
                  (padding, padding), (padding, padding)))
    x_flat = jnp.pad(xp.reshape(Npad, Cin8, L), ((0, 0), (0, 0), (0, Lr - L)))
    x_grp = (x_flat.reshape(G, NB, Cin8, Lr)
             .transpose(0, 2, 1, 3).reshape(G, Cin8, Wgrp))
    x_marg = jnp.pad(x_grp, ((0, 0), (0, 0), (_MARGIN, _MARGIN)))

    # Valid-pixel mask on one lane-rounded padded grid, tiled per image.
    mask2d = jnp.zeros((Hp, Wp), jnp.float32)
    mask2d = mask2d.at[padding:padding + H, padding:padding + W].set(1.0)
    mask = jnp.tile(jnp.pad(mask2d.reshape(1, L), ((0, 0), (0, Lr - L))),
                    (1, NB))

    # Weights flattened to (F8, K*K*Cpad) matching the kernel's tap/channel order.
    def flat_w(w, c_pad):
        w = jnp.pad(w.astype(jnp.float32),
                    ((0, 0), (0, 0), (0, c_pad - w.shape[2]),
                     (0, F8 - w.shape[3])))
        return w.reshape(K * K * c_pad, F8).transpose(1, 0)

    def flat_b(b):
        return jnp.pad(b.astype(jnp.float32), (0, F8 - F)).reshape(F8, 1)

    wf1, wf2, wf3 = flat_w(w1, Cin8), flat_w(w2, F8), flat_w(w3, F8)
    bf1, bf2, bf3 = flat_b(b1), flat_b(b2), flat_b(b3)

    kernel = functools.partial(_feature_fusion_kernel, K=K, pad=padding, Wp=Wp,
                               Wgrp=Wgrp, margin=_MARGIN)

    flops = 2 * G * Wgrp * K * K * (Cin8 * F8 + 2 * F8 * F8)
    transcendentals = 4 * G * F8 * Wgrp
    bytes_accessed = 4 * (G * Cin8 * Wtot + Wgrp
                          + F8 * K * K * (Cin8 + 2 * F8) + 3 * F8
                          + G * F8 * Wgrp)

    out_grp = pl.pallas_call(
        kernel,
        out_shape=jax.ShapeDtypeStruct((G, F8, Wgrp), jnp.float32),
        grid=(G,),
        in_specs=[
            pl.BlockSpec((1, Cin8, Wtot), lambda g: (g, 0, 0)),    # grouped input
            pl.BlockSpec((1, Wgrp), lambda g: (0, 0)),             # border mask
            pl.BlockSpec((F8, K * K * Cin8), lambda g: (0, 0)),    # w1
            pl.BlockSpec((F8, 1), lambda g: (0, 0)),               # b1
            pl.BlockSpec((F8, K * K * F8), lambda g: (0, 0)),      # w2
            pl.BlockSpec((F8, 1), lambda g: (0, 0)),               # b2
            pl.BlockSpec((F8, K * K * F8), lambda g: (0, 0)),      # w3
            pl.BlockSpec((F8, 1), lambda g: (0, 0)),               # b3
        ],
        out_specs=pl.BlockSpec((1, F8, Wgrp), lambda g: (g, 0, 0)),
        scratch_shapes=[
            pltpu.VMEM((F8, Wtot), jnp.float32),                   # hold (padded)
            pltpu.VMEM((F8, Wtot), jnp.float32),                   # step (padded)
            pltpu.VMEM((K * K * max(Cin8, F8), Wgrp), jnp.float32),  # im2col
        ],
        compiler_params=pltpu.CompilerParams(
            dimension_semantics=("parallel",),
            vmem_limit_bytes=32 * 1024 * 1024),
        cost_estimate=pl.CostEstimate(flops=flops,
                                      transcendentals=transcendentals,
                                      bytes_accessed=bytes_accessed),
    )(x_marg, mask, wf1, bf1, wf2, bf2, wf3, bf3)

    # Ungroup, crop the zero border / padding channels, restore NCHW.
    out = (out_grp.reshape(G, F8, NB, Lr).transpose(0, 2, 1, 3)
           .reshape(Npad, F8, Lr)[:N, :F, :L].reshape(N, F, Hp, Wp))
    return out[:, :, padding:padding + H,
               padding:padding + W].astype(x_nchw.dtype)


def _reference_forward(params, x, padding):
    """Pure-JAX reference matching the PyTorch module (for the self-check)."""
    def conv(v, w, b):
        y = jax.lax.conv_general_dilated(
            v, w, window_strides=(1, 1),
            padding=[(padding, padding), (padding, padding)],
            dimension_numbers=("NCHW", "HWIO", "NCHW"),
            precision=jax.lax.Precision.HIGHEST)
        return y + b.reshape(1, -1, 1, 1)

    def mish(v):
        return v * jnp.tanh(jax.nn.softplus(v))

    hold = mish(conv(x, params["w1"], params["b1"]))
    step = mish(conv(hold, params["w2"], params["b2"]))
    return conv(step, params["w3"], params["b3"]) + hold


if __name__ == "__main__":
    # Small, module-consistent shapes.
    batch, in_chan, spatial = 2, 4, 16
    filters, kernel_size, padding = 8, 3, 1

    key = jax.random.PRNGKey(0)
    kx, kp = jax.random.split(key)
    x = jax.random.normal(kx, (batch, in_chan, spatial, spatial), jnp.float32)
    params = init_feature_fusion_params(kp, in_chan, filters, kernel_size)

    out = jax.block_until_ready(feature_fusion_forward(params, x, padding))
    assert out.shape == (batch, filters, spatial, spatial), out.shape

    ref = jax.block_until_ready(_reference_forward(params, x, padding))
    max_err = float(jnp.max(jnp.abs(out - ref)))
    assert jnp.allclose(out, ref, atol=3e-2, rtol=3e-2), f"max|diff|={max_err}"
    print("KERNEL_OK")
</pallas_src>

<mosaic_0001>
module attributes {stable_mosaic.version = 11 : i64} {
  func.func @_feature_fusion_kernel(%arg0: i32, %arg1: memref<1x8x1024xf32, #tpu.memory_space<vmem>>, %arg2: memref<1x768xf32, #tpu.memory_space<vmem>>, %arg3: memref<8x72xf32, #tpu.memory_space<vmem>>, %arg4: memref<8x1xf32, #tpu.memory_space<vmem>>, %arg5: memref<8x72xf32, #tpu.memory_space<vmem>>, %arg6: memref<8x1xf32, #tpu.memory_space<vmem>>, %arg7: memref<8x72xf32, #tpu.memory_space<vmem>>, %arg8: memref<8x1xf32, #tpu.memory_space<vmem>>, %arg9: memref<1x8x768xf32, #tpu.memory_space<vmem>>, %arg10: memref<8x1024xf32, #tpu.memory_space<vmem>>, %arg11: memref<8x1024xf32, #tpu.memory_space<vmem>>, %arg12: memref<72x768xf32, #tpu.memory_space<vmem>>) attributes {dimension_semantics = [#tpu.dimension_semantics<parallel>], iteration_bounds = array<i64: 1>, scalar_prefetch = 0 : i64, scratch_operands = 3 : i64, tpu.core_type = #tpu.core_type<tc>, window_params = [{transform_indices = @transform_0, window_bounds = array<i64: 1, 8, 1024>}, {pipeline_mode = #tpu.pipeline_mode<synchronous>, transform_indices = @transform_1, window_bounds = array<i64: 1, 768>}, {pipeline_mode = #tpu.pipeline_mode<synchronous>, transform_indices = @transform_2, window_bounds = array<i64: 8, 72>}, {pipeline_mode = #tpu.pipeline_mode<synchronous>, transform_indices = @transform_3, window_bounds = array<i64: 8, 1>}, {pipeline_mode = #tpu.pipeline_mode<synchronous>, transform_indices = @transform_4, window_bounds = array<i64: 8, 72>}, {pipeline_mode = #tpu.pipeline_mode<synchronous>, transform_indices = @transform_5, window_bounds = array<i64: 8, 1>}, {pipeline_mode = #tpu.pipeline_mode<synchronous>, transform_indices = @transform_6, window_bounds = array<i64: 8, 72>}, {pipeline_mode = #tpu.pipeline_mode<synchronous>, transform_indices = @transform_7, window_bounds = array<i64: 8, 1>}, {transform_indices = @transform_8, window_bounds = array<i64: 1, 8, 768>}]} {
    %c0 = arith.constant 0 : index
    %c0_0 = arith.constant 0 : index
    %0 = vector.load %arg2[%c0, %c0_0] : memref<1x768xf32, #tpu.memory_space<vmem>>, vector<1x768xf32>
    %1 = vector.shape_cast %0 : vector<1x768xf32> to vector<1x768xf32>
    %2 = vector.broadcast %1 : vector<1x768xf32> to vector<8x768xf32>
    %cst = arith.constant 0.000000e+00 : f32
    %3 = vector.broadcast %cst : f32 to vector<8x768xf32>
    %4 = arith.cmpf one, %2, %3 : vector<8x768xf32>
    %cst_1 = arith.constant 0.000000e+00 : f32
    %5 = vector.broadcast %cst_1 : f32 to vector<8x128xf32>
    %c0_2 = arith.constant 0 : index
    %c0_3 = arith.constant 0 : index
    %6 = vector.load %arg10[%c0_2, %c0_3] : memref<8x1024xf32, #tpu.memory_space<vmem>>, vector<8x128xf32>
    tpu.vector_store %arg10[%c0_2, %c0_3], %5 {strides = array<i32>} : memref<8x1024xf32, #tpu.memory_space<vmem>>, vector<8x128xf32>,
    %c0_4 = arith.constant 0 : index
    %c896 = arith.constant 896 : index
    %7 = vector.load %arg10[%c0_4, %c896] : memref<8x1024xf32, #tpu.memory_space<vmem>>, vector<8x128xf32>
    tpu.vector_store %arg10[%c0_4, %c896], %5 {strides = array<i32>} : memref<8x1024xf32, #tpu.memory_space<vmem>>, vector<8x128xf32>,
    %c0_5 = arith.constant 0 : index
    %c0_6 = arith.constant 0 : index
    %8 = vector.load %arg11[%c0_5, %c0_6] : memref<8x1024xf32, #tpu.memory_space<vmem>>, vector<8x128xf32>
    tpu.vector_store %arg11[%c0_5, %c0_6], %5 {strides = array<i32>} : memref<8x1024xf32, #tpu.memory_space<vmem>>, vector<8x128xf32>,
    %c0_7 = arith.constant 0 : index
    %c896_8 = arith.constant 896 : index
    %9 = vector.load %arg11[%c0_7, %c896_8] : memref<8x1024xf32, #tpu.memory_space<vmem>>, vector<8x128xf32>
    tpu.vector_store %arg11[%c0_7, %c896_8], %5 {strides = array<i32>} : memref<8x1024xf32, #tpu.memory_space<vmem>>, vector<8x128xf32>,
    %c0_9 = arith.constant 0 : index
    %c0_10 = arith.constant 0 : index
    %c109 = arith.constant 109 : index
    %10 = vector.load %arg1[%c0_9, %c0_10, %c109] : memref<1x8x1024xf32, #tpu.memory_space<vmem>>, vector<1x8x768xf32>
    %11 = vector.shape_cast %10 : vector<1x8x768xf32> to vector<8x768xf32>
    %c0_11 = arith.constant 0 : index
    %c0_12 = arith.constant 0 : index
    %12 = vector.load %arg12[%c0_11, %c0_12] : memref<72x768xf32, #tpu.memory_space<vmem>>, vector<8x768xf32>
    tpu.vector_store %arg12[%c0_11, %c0_12], %11 {strides = array<i32>} : memref<72x768xf32, #tpu.memory_space<vmem>>, vector<8x768xf32>,
    %c0_13 = arith.constant 0 : index
    %c0_14 = arith.constant 0 : index
    %c110 = arith.constant 110 : index
    %13 = vector.load %arg1[%c0_13, %c0_14, %c110] : memref<1x8x1024xf32, #tpu.memory_space<vmem>>, vector<1x8x768xf32>
    %14 = vector.shape_cast %13 : vector<1x8x768xf32> to vector<8x768xf32>
    %c8 = arith.constant 8 : index
    %c0_15 = arith.constant 0 : index
    %15 = vector.load %arg12[%c8, %c0_15] : memref<72x768xf32, #tpu.memory_space<vmem>>, vector<8x768xf32>
    tpu.vector_store %arg12[%c8, %c0_15], %14 {strides = array<i32>} : memref<72x768xf32, #tpu.memory_space<vmem>>, vector<8x768xf32>,
    %c0_16 = arith.constant 0 : index
    %c0_17 = arith.constant 0 : index
    %c111 = arith.constant 111 : index
    %16 = vector.load %arg1[%c0_16, %c0_17, %c111] : memref<1x8x1024xf32, #tpu.memory_space<vmem>>, vector<1x8x768xf32>
    %17 = vector.shape_cast %16 : vector<1x8x768xf32> to vector<8x768xf32>
    %c16 = arith.constant 16 : index
    %c0_18 = arith.constant 0 : index
    %18 = vector.load %arg12[%c16, %c0_18] : memref<72x768xf32, #tpu.memory_space<vmem>>, vector<8x768xf32>
    tpu.vector_store %arg12[%c16, %c0_18], %17 {strides = array<i32>} : memref<72x768xf32, #tpu.memory_space<vmem>>, vector<8x768xf32>,
    %c0_19 = arith.constant 0 : index
    %c0_20 = arith.constant 0 : index
    %c127 = arith.constant 127 : index
    %19 = vector.load %arg1[%c0_19, %c0_20, %c127] : memref<1x8x1024xf32, #tpu.memory_space<vmem>>, vector<1x8x768xf32>
    %20 = vector.shape_cast %19 : vector<1x8x768xf32> to vector<8x768xf32>
    %c24 = arith.constant 24 : index
    %c0_21 = arith.constant 0 : index
    %21 = vector.load %arg12[%c24, %c0_21] : memref<72x768xf32, #tpu.memory_space<vmem>>, vector<8x768xf32>
    tpu.vector_store %arg12[%c24, %c0_21], %20 {strides = array<i32>} : memref<72x768xf32, #tpu.memory_space<vmem>>, vector<8x768xf32>,
    %c0_22 = arith.constant 0 : index
    %c0_23 = arith.constant 0 : index
    %c128 = arith.constant 128 : index
    %22 = vector.load %arg1[%c0_22, %c0_23, %c128] : memref<1x8x1024xf32, #tpu.memory_space<vmem>>, vector<1x8x768xf32>
    %23 = vector.shape_cast %22 : vector<1x8x768xf32> to vector<8x768xf32>
    %c32 = arith.constant 32 : index
    %c0_24 = arith.constant 0 : index
    %24 = vector.load %arg12[%c32, %c0_24] : memref<72x768xf32, #tpu.memory_space<vmem>>, vector<8x768xf32>
    tpu.vector_store %arg12[%c32, %c0_24], %23 {strides = array<i32>} : memref<72x768xf32, #tpu.memory_space<vmem>>, vector<8x768xf32>,
    %c0_25 = arith.constant 0 : index
    %c0_26 = arith.constant 0 : index
    %c129 = arith.constant 129 : index
    %25 = vector.load %arg1[%c0_25, %c0_26, %c129] : memref<1x8x1024xf32, #tpu.memory_space<vmem>>, vector<1x8x768xf32>
    %26 = vector.shape_cast %25 : vector<1x8x768xf32> to vector<8x768xf32>
    %c40 = arith.constant 40 : index
    %c0_27 = arith.constant 0 : index
    %27 = vector.load %arg12[%c40, %c0_27] : memref<72x768xf32, #tpu.memory_space<vmem>>, vector<8x768xf32>
    tpu.vector_store %arg12[%c40, %c0_27], %26 {strides = array<i32>} : memref<72x768xf32, #tpu.memory_space<vmem>>, vector<8x768xf32>,
    %c0_28 = arith.constant 0 : index
    %c0_29 = arith.constant 0 : index
    %c145 = arith.constant 145 : index
    %28 = vector.load %arg1[%c0_28, %c0_29, %c145] : memref<1x8x1024xf32, #tpu.memory_space<vmem>>, vector<1x8x768xf32>
    %29 = vector.shape_cast %28 : vector<1x8x768xf32> to vector<8x768xf32>
    %c48 = arith.constant 48 : index
    %c0_30 = arith.constant 0 : index
    %30 = vector.load %arg12[%c48, %c0_30] : memref<72x768xf32, #tpu.memory_space<vmem>>, vector<8x768xf32>
    tpu.vector_store %arg12[%c48, %c0_30], %29 {strides = array<i32>} : memref<72x768xf32, #tpu.memory_space<vmem>>, vector<8x768xf32>,
    %c0_31 = arith.constant 0 : index
    %c0_32 = arith.constant 0 : index
    %c146 = arith.constant 146 : index
    %31 = vector.load %arg1[%c0_31, %c0_32, %c146] : memref<1x8x1024xf32, #tpu.memory_space<vmem>>, vector<1x8x768xf32>
    %32 = vector.shape_cast %31 : vector<1x8x768xf32> to vector<8x768xf32>
    %c56 = arith.constant 56 : index
    %c0_33 = arith.constant 0 : index
    %33 = vector.load %arg12[%c56, %c0_33] : memref<72x768xf32, #tpu.memory_space<vmem>>, vector<8x768xf32>
    tpu.vector_store %arg12[%c56, %c0_33], %32 {strides = array<i32>} : memref<72x768xf32, #tpu.memory_space<vmem>>, vector<8x768xf32>,
    %c0_34 = arith.constant 0 : index
    %c0_35 = arith.constant 0 : index
    %c147 = arith.constant 147 : index
    %34 = vector.load %arg1[%c0_34, %c0_35, %c147] : memref<1x8x1024xf32, #tpu.memory_space<vmem>>, vector<1x8x768xf32>
    %35 = vector.shape_cast %34 : vector<1x8x768xf32> to vector<8x768xf32>
    %c64 = arith.constant 64 : index
    %c0_36 = arith.constant 0 : index
    %36 = vector.load %arg12[%c64, %c0_36] : memref<72x768xf32, #tpu.memory_space<vmem>>, vector<8x768xf32>
    tpu.vector_store %arg12[%c64, %c0_36], %35 {strides = array<i32>} : memref<72x768xf32, #tpu.memory_space<vmem>>, vector<8x768xf32>,
    %c0_37 = arith.constant 0 : index
    %c0_38 = arith.constant 0 : index
    %37 = vector.load %arg3[%c0_37, %c0_38] : memref<8x72xf32, #tpu.memory_space<vmem>>, vector<8x72xf32>
    %c0_39 = arith.constant 0 : index
    %c0_40 = arith.constant 0 : index
    %38 = vector.load %arg12[%c0_39, %c0_40] : memref<72x768xf32, #tpu.memory_space<vmem>>, vector<72x768xf32>
    %cst_41 = arith.constant dense<0.000000e+00> : vector<8x768xf32>
    %39 = tpu.matmul %37, %38, %cst_41 {dimension_numbers = #tpu.dot_dimension_numbers<[1], [0], [0], [1], [0, 0, 1, 1], [], []>} : vector<8x72xf32>, vector<72x768xf32>, vector<8x768xf32> -> vector<8x768xf32>
    %c0_42 = arith.constant 0 : index
    %c0_43 = arith.constant 0 : index
    %40 = vector.load %arg4[%c0_42, %c0_43] : memref<8x1xf32, #tpu.memory_space<vmem>>, vector<8x1xf32>
    %41 = vector.broadcast %40 : vector<8x1xf32> to vector<8x768xf32>
    %42 = arith.addf %39, %41 : vector<8x768xf32>
    %cst_44 = arith.constant 0.000000e+00 : f32
    %43 = vector.broadcast %cst_44 : f32 to vector<8x768xf32>
    %44 = arith.select %4, %42, %43 : vector<8x768xi1>, vector<8x768xf32>
    %cst_45 = arith.constant 2.000000e+01 : f32
    %45 = vector.broadcast %cst_45 : f32 to vector<8x768xf32>
    %46 = arith.minimumf %44, %45 : vector<8x768xf32>
    %47 = math.exp %46 : vector<8x768xf32>
    %cst_46 = arith.constant 2.000000e+00 : f32
    %48 = vector.broadcast %cst_46 : f32 to vector<8x768xf32>
    %49 = arith.addf %47, %48 : vector<8x768xf32>
    %50 = arith.mulf %47, %49 : vector<8x768xf32>
    %cst_47 = arith.constant 2.000000e+00 : f32
    %51 = vector.broadcast %cst_47 : f32 to vector<8x768xf32>
    %52 = arith.addf %50, %51 : vector<8x768xf32>
    %53 = tpu.reciprocal %52 {approx = true} : vector<8x768xf32> -> vector<8x768xf32>
    %54 = arith.mulf %50, %53 : vector<8x768xf32>
    %55 = arith.mulf %44, %54 : vector<8x768xf32>
    %c0_48 = arith.constant 0 : index
    %c128_49 = arith.constant 128 : index
    %56 = vector.load %arg10[%c0_48, %c128_49] : memref<8x1024xf32, #tpu.memory_space<vmem>>, vector<8x768xf32>
    tpu.vector_store %arg10[%c0_48, %c128_49], %55 {strides = array<i32>} : memref<8x1024xf32, #tpu.memory_space<vmem>>, vector<8x768xf32>,
    %c0_50 = arith.constant 0 : index
    %c109_51 = arith.constant 109 : index
    %57 = vector.load %arg10[%c0_50, %c109_51] : memref<8x1024xf32, #tpu.memory_space<vmem>>, vector<8x768xf32>
    %c0_52 = arith.constant 0 : index
    %c0_53 = arith.constant 0 : index
    %58 = vector.load %arg12[%c0_52, %c0_53] : memref<72x768xf32, #tpu.memory_space<vmem>>, vector<8x768xf32>
    tpu.vector_store %arg12[%c0_52, %c0_53], %57 {strides = array<i32>} : memref<72x768xf32, #tpu.memory_space<vmem>>, vector<8x768xf32>,
    %c0_54 = arith.constant 0 : index
    %c110_55 = arith.constant 110 : index
    %59 = vector.load %arg10[%c0_54, %c110_55] : memref<8x1024xf32, #tpu.memory_space<vmem>>, vector<8x768xf32>
    %c8_56 = arith.constant 8 : index
    %c0_57 = arith.constant 0 : index
    %60 = vector.load %arg12[%c8_56, %c0_57] : memref<72x768xf32, #tpu.memory_space<vmem>>, vector<8x768xf32>
    tpu.vector_store %arg12[%c8_56, %c0_57], %59 {strides = array<i32>} : memref<72x768xf32, #tpu.memory_space<vmem>>, vector<8x768xf32>,
    %c0_58 = arith.constant 0 : index
    %c111_59 = arith.constant 111 : index
    %61 = vector.load %arg10[%c0_58, %c111_59] : memref<8x1024xf32, #tpu.memory_space<vmem>>, vector<8x768xf32>
    %c16_60 = arith.constant 16 : index
    %c0_61 = arith.constant 0 : index
    %62 = vector.load %arg12[%c16_60, %c0_61] : memref<72x768xf32, #tpu.memory_space<vmem>>, vector<8x768xf32>
    tpu.vector_store %arg12[%c16_60, %c0_61], %61 {strides = array<i32>} : memref<72x768xf32, #tpu.memory_space<vmem>>, vector<8x768xf32>,
    %c0_62 = arith.constant 0 : index
    %c127_63 = arith.constant 127 : index
    %63 = vector.load %arg10[%c0_62, %c127_63] : memref<8x1024xf32, #tpu.memory_space<vmem>>, vector<8x768xf32>
    %c24_64 = arith.constant 24 : index
    %c0_65 = arith.constant 0 : index
    %64 = vector.load %arg12[%c24_64, %c0_65] : memref<72x768xf32, #tpu.memory_space<vmem>>, vector<8x768xf32>
    tpu.vector_store %arg12[%c24_64, %c0_65], %63 {strides = array<i32>} : memref<72x768xf32, #tpu.memory_space<vmem>>, vector<8x768xf32>,
    %c0_66 = arith.constant 0 : index
    %c128_67 = arith.constant 128 : index
    %65 = vector.load %arg10[%c0_66, %c128_67] : memref<8x1024xf32, #tpu.memory_space<vmem>>, vector<8x768xf32>
    %c32_68 = arith.constant 32 : index
    %c0_69 = arith.constant 0 : index
    %66 = vector.load %arg12[%c32_68, %c0_69] : memref<72x768xf32, #tpu.memory_space<vmem>>, vector<8x768xf32>
    tpu.vector_store %arg12[%c32_68, %c0_69], %65 {strides = array<i32>} : memref<72x768xf32, #tpu.memory_space<vmem>>, vector<8x768xf32>,
    %c0_70 = arith.constant 0 : index
    %c129_71 = arith.constant 129 : index
    %67 = vector.load %arg10[%c0_70, %c129_71] : memref<8x1024xf32, #tpu.memory_space<vmem>>, vector<8x768xf32>
    %c40_72 = arith.constant 40 : index
    %c0_73 = arith.constant 0 : index
    %68 = vector.load %arg12[%c40_72, %c0_73] : memref<72x768xf32, #tpu.memory_space<vmem>>, vector<8x768xf32>
    tpu.vector_store %arg12[%c40_72, %c0_73], %67 {strides = array<i32>} : memref<72x768xf32, #tpu.memory_space<vmem>>, vector<8x768xf32>,
    %c0_74 = arith.constant 0 : index
    %c145_75 = arith.constant 145 : index
    %69 = vector.load %arg10[%c0_74, %c145_75] : memref<8x1024xf32, #tpu.memory_space<vmem>>, vector<8x768xf32>
    %c48_76 = arith.constant 48 : index
    %c0_77 = arith.constant 0 : index
    %70 = vector.load %arg12[%c48_76, %c0_77] : memref<72x768xf32, #tpu.memory_space<vmem>>, vector<8x768xf32>
    tpu.vector_store %arg12[%c48_76, %c0_77], %69 {strides = array<i32>} : memref<72x768xf32, #tpu.memory_space<vmem>>, vector<8x768xf32>,
    %c0_78 = arith.constant 0 : index
    %c146_79 = arith.constant 146 : index
    %71 = vector.load %arg10[%c0_78, %c146_79] : memref<8x1024xf32, #tpu.memory_space<vmem>>, vector<8x768xf32>
    %c56_80 = arith.constant 56 : index
    %c0_81 = arith.constant 0 : index
    %72 = vector.load %arg12[%c56_80, %c0_81] : memref<72x768xf32, #tpu.memory_space<vmem>>, vector<8x768xf32>
    tpu.vector_store %arg12[%c56_80, %c0_81], %71 {strides = array<i32>} : memref<72x768xf32, #tpu.memory_space<vmem>>, vector<8x768xf32>,
    %c0_82 = arith.constant 0 : index
    %c147_83 = arith.constant 147 : index
    %73 = vector.load %arg10[%c0_82, %c147_83] : memref<8x1024xf32, #tpu.memory_space<vmem>>, vector<8x768xf32>
    %c64_84 = arith.constant 64 : index
    %c0_85 = arith.constant 0 : index
    %74 = vector.load %arg12[%c64_84, %c0_85] : memref<72x768xf32, #tpu.memory_space<vmem>>, vector<8x768xf32>
    tpu.vector_store %arg12[%c64_84, %c0_85], %73 {strides = array<i32>} : memref<72x768xf32, #tpu.memory_space<vmem>>, vector<8x768xf32>,
    %c0_86 = arith.constant 0 : index
    %c0_87 = arith.constant 0 : index
    %75 = vector.load %arg5[%c0_86, %c0_87] : memref<8x72xf32, #tpu.memory_space<vmem>>, vector<8x72xf32>
    %c0_88 = arith.constant 0 : index
    %c0_89 = arith.constant 0 : index
    %76 = vector.load %arg12[%c0_88, %c0_89] : memref<72x768xf32, #tpu.memory_space<vmem>>, vector<72x768xf32>
    %cst_90 = arith.constant dense<0.000000e+00> : vector<8x768xf32>
    %77 = tpu.matmul %75, %76, %cst_90 {dimension_numbers = #tpu.dot_dimension_numbers<[1], [0], [0], [1], [0, 0, 1, 1], [], []>} : vector<8x72xf32>, vector<72x768xf32>, vector<8x768xf32> -> vector<8x768xf32>
    %c0_91 = arith.constant 0 : index
    %c0_92 = arith.constant 0 : index
    %78 = vector.load %arg6[%c0_91, %c0_92] : memref<8x1xf32, #tpu.memory_space<vmem>>, vector<8x1xf32>
    %79 = vector.broadcast %78 : vector<8x1xf32> to vector<8x768xf32>
    %80 = arith.addf %77, %79 : vector<8x768xf32>
    %cst_93 = arith.constant 0.000000e+00 : f32
    %81 = vector.broadcast %cst_93 : f32 to vector<8x768xf32>
    %82 = arith.select %4, %80, %81 : vector<8x768xi1>, vector<8x768xf32>
    %cst_94 = arith.constant 2.000000e+01 : f32
    %83 = vector.broadcast %cst_94 : f32 to vector<8x768xf32>
    %84 = arith.minimumf %82, %83 : vector<8x768xf32>
    %85 = math.exp %84 : vector<8x768xf32>
    %cst_95 = arith.constant 2.000000e+00 : f32
    %86 = vector.broadcast %cst_95 : f32 to vector<8x768xf32>
    %87 = arith.addf %85, %86 : vector<8x768xf32>
    %88 = arith.mulf %85, %87 : vector<8x768xf32>
    %cst_96 = arith.constant 2.000000e+00 : f32
    %89 = vector.broadcast %cst_96 : f32 to vector<8x768xf32>
    %90 = arith.addf %88, %89 : vector<8x768xf32>
    %91 = tpu.reciprocal %90 {approx = true} : vector<8x768xf32> -> vector<8x768xf32>
    %92 = arith.mulf %88, %91 : vector<8x768xf32>
    %93 = arith.mulf %82, %92 : vector<8x768xf32>
    %c0_97 = arith.constant 0 : index
    %c128_98 = arith.constant 128 : index
    %94 = vector.load %arg11[%c0_97, %c128_98] : memref<8x1024xf32, #tpu.memory_space<vmem>>, vector<8x768xf32>
    tpu.vector_store %arg11[%c0_97, %c128_98], %93 {strides = array<i32>} : memref<8x1024xf32, #tpu.memory_space<vmem>>, vector<8x768xf32>,
    %c0_99 = arith.constant 0 : index
    %c109_100 = arith.constant 109 : index
    %95 = vector.load %arg11[%c0_99, %c109_100] : memref<8x1024xf32, #tpu.memory_space<vmem>>, vector<8x768xf32>
    %c0_101 = arith.constant 0 : index
    %c0_102 = arith.constant 0 : index
    %96 = vector.load %arg12[%c0_101, %c0_102] : memref<72x768xf32, #tpu.memory_space<vmem>>, vector<8x768xf32>
    tpu.vector_store %arg12[%c0_101, %c0_102], %95 {strides = array<i32>} : memref<72x768xf32, #tpu.memory_space<vmem>>, vector<8x768xf32>,
    %c0_103 = arith.constant 0 : index
    %c110_104 = arith.constant 110 : index
    %97 = vector.load %arg11[%c0_103, %c110_104] : memref<8x1024xf32, #tpu.memory_space<vmem>>, vector<8x768xf32>
    %c8_105 = arith.constant 8 : index
    %c0_106 = arith.constant 0 : index
    %98 = vector.load %arg12[%c8_105, %c0_106] : memref<72x768xf32, #tpu.memory_space<vmem>>, vector<8x768xf32>
    tpu.vector_store %arg12[%c8_105, %c0_106], %97 {strides = array<i32>} : memref<72x768xf32, #tpu.memory_space<vmem>>, vector<8x768xf32>,
    %c0_107 = arith.constant 0 : index
    %c111_108 = arith.constant 111 : index
    %99 = vector.load %arg11[%c0_107, %c111_108] : memref<8x1024xf32, #tpu.memory_space<vmem>>, vector<8x768xf32>
    %c16_109 = arith.constant 16 : index
    %c0_110 = arith.constant 0 : index
    %100 = vector.load %arg12[%c16_109, %c0_110] : memref<72x768xf32, #tpu.memory_space<vmem>>, vector<8x768xf32>
    tpu.vector_store %arg12[%c16_109, %c0_110], %99 {strides = array<i32>} : memref<72x768xf32, #tpu.memory_space<vmem>>, vector<8x768xf32>,
    %c0_111 = arith.constant 0 : index
    %c127_112 = arith.constant 127 : index
    %101 = vector.load %arg11[%c0_111, %c127_112] : memref<8x1024xf32, #tpu.memory_space<vmem>>, vector<8x768xf32>
    %c24_113 = arith.constant 24 : index
    %c0_114 = arith.constant 0 : index
    %102 = vector.load %arg12[%c24_113, %c0_114] : memref<72x768xf32, #tpu.memory_space<vmem>>, vector<8x768xf32>
    tpu.vector_store %arg12[%c24_113, %c0_114], %101 {strides = array<i32>} : memref<72x768xf32, #tpu.memory_space<vmem>>, vector<8x768xf32>,
    %c0_115 = arith.constant 0 : index
    %c128_116 = arith.constant 128 : index
    %103 = vector.load %arg11[%c0_115, %c128_116] : memref<8x1024xf32, #tpu.memory_space<vmem>>, vector<8x768xf32>
    %c32_117 = arith.constant 32 : index
    %c0_118 = arith.constant 0 : index
    %104 = vector.load %arg12[%c32_117, %c0_118] : memref<72x768xf32, #tpu.memory_space<vmem>>, vector<8x768xf32>
    tpu.vector_store %arg12[%c32_117, %c0_118], %103 {strides = array<i32>} : memref<72x768xf32, #tpu.memory_space<vmem>>, vector<8x768xf32>,
    %c0_119 = arith.constant 0 : index
    %c129_120 = arith.constant 129 : index
    %105 = vector.load %arg11[%c0_119, %c129_120] : memref<8x1024xf32, #tpu.memory_space<vmem>>, vector<8x768xf32>
    %c40_121 = arith.constant 40 : index
    %c0_122 = arith.constant 0 : index
    %106 = vector.load %arg12[%c40_121, %c0_122] : memref<72x768xf32, #tpu.memory_space<vmem>>, vector<8x768xf32>
    tpu.vector_store %arg12[%c40_121, %c0_122], %105 {strides = array<i32>} : memref<72x768xf32, #tpu.memory_space<vmem>>, vector<8x768xf32>,
    %c0_123 = arith.constant 0 : index
    %c145_124 = arith.constant 145 : index
    %107 = vector.load %arg11[%c0_123, %c145_124] : memref<8x1024xf32, #tpu.memory_space<vmem>>, vector<8x768xf32>
    %c48_125 = arith.constant 48 : index
    %c0_126 = arith.constant 0 : index
    %108 = vector.load %arg12[%c48_125, %c0_126] : memref<72x768xf32, #tpu.memory_space<vmem>>, vector<8x768xf32>
    tpu.vector_store %arg12[%c48_125, %c0_126], %107 {strides = array<i32>} : memref<72x768xf32, #tpu.memory_space<vmem>>, vector<8x768xf32>,
    %c0_127 = arith.constant 0 : index
    %c146_128 = arith.constant 146 : index
    %109 = vector.load %arg11[%c0_127, %c146_128] : memref<8x1024xf32, #tpu.memory_space<vmem>>, vector<8x768xf32>
    %c56_129 = arith.constant 56 : index
    %c0_130 = arith.constant 0 : index
    %110 = vector.load %arg12[%c56_129, %c0_130] : memref<72x768xf32, #tpu.memory_space<vmem>>, vector<8x768xf32>
    tpu.vector_store %arg12[%c56_129, %c0_130], %109 {strides = array<i32>} : memref<72x768xf32, #tpu.memory_space<vmem>>, vector<8x768xf32>,
    %c0_131 = arith.constant 0 : index
    %c147_132 = arith.constant 147 : index
    %111 = vector.load %arg11[%c0_131, %c147_132] : memref<8x1024xf32, #tpu.memory_space<vmem>>, vector<8x768xf32>
    %c64_133 = arith.constant 64 : index
    %c0_134 = arith.constant 0 : index
    %112 = vector.load %arg12[%c64_133, %c0_134] : memref<72x768xf32, #tpu.memory_space<vmem>>, vector<8x768xf32>
    tpu.vector_store %arg12[%c64_133, %c0_134], %111 {strides = array<i32>} : memref<72x768xf32, #tpu.memory_space<vmem>>, vector<8x768xf32>,
    %c0_135 = arith.constant 0 : index
    %c0_136 = arith.constant 0 : index
    %113 = vector.load %arg7[%c0_135, %c0_136] : memref<8x72xf32, #tpu.memory_space<vmem>>, vector<8x72xf32>
    %c0_137 = arith.constant 0 : index
    %c0_138 = arith.constant 0 : index
    %114 = vector.load %arg12[%c0_137, %c0_138] : memref<72x768xf32, #tpu.memory_space<vmem>>, vector<72x768xf32>
    %cst_139 = arith.constant dense<0.000000e+00> : vector<8x768xf32>
    %115 = tpu.matmul %113, %114, %cst_139 {dimension_numbers = #tpu.dot_dimension_numbers<[1], [0], [0], [1], [0, 0, 1, 1], [], []>} : vector<8x72xf32>, vector<72x768xf32>, vector<8x768xf32> -> vector<8x768xf32>
    %c0_140 = arith.constant 0 : index
    %c0_141 = arith.constant 0 : index
    %116 = vector.load %arg8[%c0_140, %c0_141] : memref<8x1xf32, #tpu.memory_space<vmem>>, vector<8x1xf32>
    %117 = vector.broadcast %116 : vector<8x1xf32> to vector<8x768xf32>
    %118 = arith.addf %115, %117 : vector<8x768xf32>
    %cst_142 = arith.constant 0.000000e+00 : f32
    %119 = vector.broadcast %cst_142 : f32 to vector<8x768xf32>
    %120 = arith.select %4, %118, %119 : vector<8x768xi1>, vector<8x768xf32>
    %121 = arith.addf %120, %55 : vector<8x768xf32>
    %122 = vector.shape_cast %121 : vector<8x768xf32> to vector<1x8x768xf32>
    %c0_143 = arith.constant 0 : index
    %c0_144 = arith.constant 0 : index
    %c0_145 = arith.constant 0 : index
    %123 = vector.load %arg9[%c0_143, %c0_144, %c0_145] : memref<1x8x768xf32, #tpu.memory_space<vmem>>, vector<1x8x768xf32>
    tpu.vector_store %arg9[%c0_143, %c0_144, %c0_145], %122 {strides = array<i32>} : memref<1x8x768xf32, #tpu.memory_space<vmem>>, vector<1x8x768xf32>,
    return
  }
  func.func @transform_0(%arg0: i32) -> (i32, i32, i32) {
    %c0_i32 = arith.constant 0 : i32
    %c0_i32_0 = arith.constant 0 : i32
    %c0_i32_1 = arith.constant 0 : i32
    return %arg0, %c0_i32, %c0_i32_0 : i32, i32, i32
  }
  func.func @transform_1(%arg0: i32) -> (i32, i32) {
    %c0_i32 = arith.constant 0 : i32
    %c0_i32_0 = arith.constant 0 : i32
    %c0_i32_1 = arith.constant 0 : i32
    return %c0_i32, %c0_i32_0 : i32, i32
  }
  func.func @transform_2(%arg0: i32) -> (i32, i32) {
    %c0_i32 = arith.constant 0 : i32
    %c0_i32_0 = arith.constant 0 : i32
    %c0_i32_1 = arith.constant 0 : i32
    return %c0_i32, %c0_i32_0 : i32, i32
  }
  func.func @transform_3(%arg0: i32) -> (i32, i32) {
    %c0_i32 = arith.constant 0 : i32
    %c0_i32_0 = arith.constant 0 : i32
    %c0_i32_1 = arith.constant 0 : i32
    return %c0_i32, %c0_i32_0 : i32, i32
  }
  func.func @transform_4(%arg0: i32) -> (i32, i32) {
    %c0_i32 = arith.constant 0 : i32
    %c0_i32_0 = arith.constant 0 : i32
    %c0_i32_1 = arith.constant 0 : i32
    return %c0_i32, %c0_i32_0 : i32, i32
  }
  func.func @transform_5(%arg0: i32) -> (i32, i32) {
    %c0_i32 = arith.constant 0 : i32
    %c0_i32_0 = arith.constant 0 : i32
    %c0_i32_1 = arith.constant 0 : i32
    return %c0_i32, %c0_i32_0 : i32, i32
  }
  func.func @transform_6(%arg0: i32) -> (i32, i32) {
    %c0_i32 = arith.constant 0 : i32
    %c0_i32_0 = arith.constant 0 : i32
    %c0_i32_1 = arith.constant 0 : i32
    return %c0_i32, %c0_i32_0 : i32, i32
  }
  func.func @transform_7(%arg0: i32) -> (i32, i32) {
    %c0_i32 = arith.constant 0 : i32
    %c0_i32_0 = arith.constant 0 : i32
    %c0_i32_1 = arith.constant 0 : i32
    return %c0_i32, %c0_i32_0 : i32, i32
  }
  func.func @transform_8(%arg0: i32) -> (i32, i32, i32) {
    %c0_i32 = arith.constant 0 : i32
    %c0_i32_0 = arith.constant 0 : i32
    %c0_i32_1 = arith.constant 0 : i32
    return %arg0, %c0_i32, %c0_i32_0 : i32, i32, i32
  }
}

</mosaic_0001>

<llo_original>
// kernel: tpu_custom_call.1
$region0: #{tpu_custom_call.1}
  #allocation0 [shape = 'u32[]', space=smem, size = 0x4, offset = 0x4, fixed_abs, tag = 'smem constant byte address 0x4 - core index']
  #allocation1 [shape = 'u32[144,128]{1,0:T(1,128)}', space=vmem, size = 0x12000, scoped, tag = 'internal scratch']
  #allocation2 [shape = 'f32[8,1024]{1,0:T(8,128)}', space=vmem, size = 0x8000, scoped, tag = 'scratch operand']
  #allocation3 [shape = 'f32[8,1024]{1,0:T(8,128)}', space=vmem, size = 0x8000, scoped, tag = 'scratch operand']
  #allocation4 [shape = 'f32[72,768]{1,0:T(8,128)}', space=vmem, size = 0x36000, scoped, tag = 'scratch operand']
  %s0 = inlined_call_operand.hbm [shape: f32[1,8,1024], index: 0, kind: input, shape index: {}]
  %s1 = inlined_call_operand.vmem [shape: f32[1,768], index: 1, kind: input, shape index: {}]
  %s2 = inlined_call_operand.vmem [shape: f32[8,72], index: 2, kind: input, shape index: {}]
  %s3 = inlined_call_operand.vmem [shape: f32[8,1], index: 3, kind: input, shape index: {}]
  %s4 = inlined_call_operand.vmem [shape: f32[8,72], index: 4, kind: input, shape index: {}]
  %s5 = inlined_call_operand.vmem [shape: f32[8,1], index: 5, kind: input, shape index: {}]
  %s6 = inlined_call_operand.vmem [shape: f32[8,72], index: 6, kind: input, shape index: {}]
  %s7 = inlined_call_operand.vmem [shape: f32[8,1], index: 7, kind: input, shape index: {}]
  %s8 = inlined_call_operand.hbm [shape: f32[1,8,768], index: 8, kind: output, shape index: {}]
  %s9 = sld [smem:[#allocation0]]
  $region46: #{tpu_custom_call.1} parent=0
    _
  %s11 = ssub.s32 1, %s9
  %s12 = scalar_select 0, %s11, %s9
  $region1: #{tpu_custom_call.1} parent=0
    #allocation5 [shape = 'u8[32768]{0}', space=vmem, size = 0x8000, scoped, tag = 'input window, operand 0, single buffered']
    #allocation6 [shape = 's32[1]{0}', space=sflag, size = 0x4, scoped, tag = 'scoped memory for tpu_custom_call.1']
    #allocation7 [shape = 's32[1]{0}', space=sflag, size = 0x4, scoped, tag = 'scoped memory for tpu_custom_call.1']
    #allocation8 [shape = 'u8[24576]{0}', space=vmem, size = 0x6000, scoped, tag = 'output window, operand 0, single buffered']
    %13 = vsyncpa [#allocation6], 0
    %14 = vsyncpa [#allocation7], 0
    // Predicated region
    $region2: #{tpu_custom_call.1} parent=1 // pred_check
      _
    $region3: #{tpu_custom_call.1} parent=1 // pred_check_branch
      %16 = sbr.rel (0) target = $region5
    $region4: #{tpu_custom_call.1} parent=1 // pred_region
      %s18 = ssub.s32 1024, 1024
      %19 = vsyncadd [#allocation6], %s18
      %s21 = sshll.u32 [#allocation5], 4
      %s22 = int_to_ptr.vmem [resolvable:$true] %s21
      %24 = dma.hbm_to_vmem [thread:$0]  %s0, 1024, %s22, [#allocation6]
    $region5: #{tpu_custom_call.1} parent=1 // pred_fallthru
      _
    // Predicated region
    $region6: #{tpu_custom_call.1} parent=1 // pred_check
      _
    $region7: #{tpu_custom_call.1} parent=1 // pred_check_branch
      %26 = sbr.rel (0) target = $region9
    $region8: #{tpu_custom_call.1} parent=1 // pred_region
      _
    $region9: #{tpu_custom_call.1} parent=1 // pred_fallthru
      _
    // Predicated region
    $region10: #{tpu_custom_call.1} parent=1 // pred_check
      _
    $region11: #{tpu_custom_call.1} parent=1 // pred_check_branch
      %28 = sbr.rel (0) target = $region13
    $region12: #{tpu_custom_call.1} parent=1 // pred_region
      _
    $region13: #{tpu_custom_call.1} parent=1 // pred_fallthru
      _
    // Predicated region
    $region14: #{tpu_custom_call.1} parent=1 // pred_check
      _
    $region15: #{tpu_custom_call.1} parent=1 // pred_check_branch
      %30 = sbr.rel (0) target = $region17
    $region16: #{tpu_custom_call.1} parent=1 // pred_region
      _
    $region17: #{tpu_custom_call.1} parent=1 // pred_fallthru
      _
    // Predicated region
    $region18: #{tpu_custom_call.1} parent=1 // pred_check
      _
    $region19: #{tpu_custom_call.1} parent=1 // pred_check_branch
      %32 = sbr.rel (0) target = $region21
    $region20: #{tpu_custom_call.1} parent=1 // pred_region
      _
    $region21: #{tpu_custom_call.1} parent=1 // pred_fallthru
      _
    // Predicated region
    $region22: #{tpu_custom_call.1} parent=1 // pred_check
      _
    $region23: #{tpu_custom_call.1} parent=1 // pred_check_branch
      %34 = sbr.rel (0) target = $region25
    $region24: #{tpu_custom_call.1} parent=1 // pred_region
      _
    $region25: #{tpu_custom_call.1} parent=1 // pred_fallthru
      _
    // Predicated region
    $region26: #{tpu_custom_call.1} parent=1 // pred_check
      _
    $region27: #{tpu_custom_call.1} parent=1 // pred_check_branch
      %36 = sbr.rel (0) target = $region29
    $region28: #{tpu_custom_call.1} parent=1 // pred_region
      _
    $region29: #{tpu_custom_call.1} parent=1 // pred_fallthru
      _
    // Predicated region
    $region30: #{tpu_custom_call.1} parent=1 // pred_check
      _
    $region31: #{tpu_custom_call.1} parent=1 // pred_check_branch
      %38 = sbr.rel (0) target = $region33
    $region32: #{tpu_custom_call.1} parent=1 // pred_region
      _
    $region33: #{tpu_custom_call.1} parent=1 // pred_fallthru
      _
    // Predicated region
    $region34: #{tpu_custom_call.1} parent=1 // pred_check
      _
    $region35: #{tpu_custom_call.1} parent=1 // pred_check_branch
      %40 = sbr.rel (0) target = $region37
    $region36: #{tpu_custom_call.1} parent=1 // pred_region
      %41 = dma.done [#allocation6], 1024
    $region37: #{tpu_custom_call.1} parent=1 // pred_fallthru
      _
    %v42 = vld [vmem:[%s1] sm:$0x3f]
    %v44 = vlaneseq
    %v45 = vshrl.u32 %v44, 7
    %v46 = vsub.s32 0, %v45
    %v47 = vrot.slane %v42, %v46
    %v48 = vlaneseq
    %v49 = vshrl.u32 %v48, 7
    %v50 = vsub.s32 1, %v49
    %v51 = vrot.slane %v42, %v50
    %v52 = vlaneseq
    %v53 = vshrl.u32 %v52, 7
    %v54 = vsub.s32 2, %v53
    %v55 = vrot.slane %v42, %v54
    %v56 = vlaneseq
    %v57 = vshrl.u32 %v56, 7
    %v58 = vsub.s32 3, %v57
    %v59 = vrot.slane %v42, %v58
    %v60 = vlaneseq
    %v61 = vshrl.u32 %v60, 7
    %v62 = vsub.s32 4, %v61
    %v63 = vrot.slane %v42, %v62
    %v64 = vlaneseq
    %v65 = vshrl.u32 %v64, 7
    %v66 = vsub.s32 5, %v65
    %v67 = vrot.slane %v42, %v66
    %vm74 = vcmp.ne.f32.partialorder %v47, 0.0
    %vm75 = vcmp.ne.f32.partialorder %v51, 0.0
    %vm76 = vcmp.ne.f32.partialorder %v55, 0.0
    %vm77 = vcmp.ne.f32.partialorder %v59, 0.0
    %vm78 = vcmp.ne.f32.partialorder %v63, 0.0
    %vm79 = vcmp.ne.f32.partialorder %v67, 0.0
    %80 = vst [vmem:[#allocation2] sm:$0xff] 0.0
    %81 = vst [vmem:[#allocation2 + $0x38] sm:$0xff] 0.0
    %82 = vst [vmem:[#allocation3] sm:$0xff] 0.0
    %83 = vst [vmem:[#allocation3 + $0x38] sm:$0xff] 0.0
    %v84 = vld [vmem:[#allocation5] sm:$0xff]
    %v85 = vld [vmem:[#allocation5 + $0x8] sm:$0xff]
    %v86 = vld [vmem:[#allocation5 + $0x10] sm:$0xff]
    %v87 = vld [vmem:[#allocation5 + $0x18] sm:$0xff]
    %v88 = vld [vmem:[#allocation5 + $0x20] sm:$0xff]
    %v89 = vld [vmem:[#allocation5 + $0x28] sm:$0xff]
    %v90 = vld [vmem:[#allocation5 + $0x30] sm:$0xff]
    %98 = vrot.lane.b32.xlu0 %v84, 19
    %v99 = vpop.permute.xlu0 %98
    %100 = vrot.lane.b32.xlu0 %v85, 19
    %v101 = vpop.permute.xlu0 %100
    %102 = vrot.lane.b32.xlu0 %v86, 19
    %v103 = vpop.permute.xlu0 %102
    %104 = vrot.lane.b32.xlu0 %v87, 19
    %v105 = vpop.permute.xlu0 %104
    %106 = vrot.lane.b32.xlu0 %v88, 19
    %v107 = vpop.permute.xlu0 %106
    %108 = vrot.lane.b32.xlu0 %v89, 19
    %v109 = vpop.permute.xlu0 %108
    %110 = vrot.lane.b32.xlu0 %v90, 19
    %v111 = vpop.permute.xlu0 %110
    %vm112 = vcmask 154624
    %v113 = vsel %vm112, %v99, %v101
    %v114 = vsel %vm112, %v101, %v103
    %v115 = vsel %vm112, %v103, %v105
    %v116 = vsel %vm112, %v105, %v107
    %v117 = vsel %vm112, %v107, %v109
    %v118 = vsel %vm112, %v109, %v111
    %125 = vst [vmem:[#allocation4] sm:$0xff] %v113
    %126 = vst [vmem:[#allocation4 + $0x8] sm:$0xff] %v114
    %127 = vst [vmem:[#allocation4 + $0x10] sm:$0xff] %v115
    %128 = vst [vmem:[#allocation4 + $0x18] sm:$0xff] %v116
    %129 = vst [vmem:[#allocation4 + $0x20] sm:$0xff] %v117
    %130 = vst [vmem:[#allocation4 + $0x28] sm:$0xff] %v118
    %v131 = vld [vmem:[#allocation5] sm:$0xff]
    %v132 = vld [vmem:[#allocation5 + $0x8] sm:$0xff]
    %v133 = vld [vmem:[#allocation5 + $0x10] sm:$0xff]
    %v134 = vld [vmem:[#allocation5 + $0x18] sm:$0xff]
    %v135 = vld [vmem:[#allocation5 + $0x20] sm:$0xff]
    %v136 = vld [vmem:[#allocation5 + $0x28] sm:$0xff]
    %v137 = vld [vmem:[#allocation5 + $0x30] sm:$0xff]
    %145 = vrot.lane.b32.xlu0 %v131, 18
    %v146 = vpop.permute.xlu0 %145
    %147 = vrot.lane.b32.xlu0 %v132, 18
    %v148 = vpop.permute.xlu0 %147
    %149 = vrot.lane.b32.xlu0 %v133, 18
    %v150 = vpop.permute.xlu0 %149
    %151 = vrot.lane.b32.xlu0 %v134, 18
    %v152 = vpop.permute.xlu0 %151
    %153 = vrot.lane.b32.xlu0 %v135, 18
    %v154 = vpop.permute.xlu0 %153
    %155 = vrot.lane.b32.xlu0 %v136, 18
    %v156 = vpop.permute.xlu0 %155
    %157 = vrot.lane.b32.xlu0 %v137, 18
    %v158 = vpop.permute.xlu0 %157
    %vm159 = vcmask 146432
    %v160 = vsel %vm159, %v146, %v148
    %v161 = vsel %vm159, %v148, %v150
    %v162 = vsel %vm159, %v150, %v152
    %v163 = vsel %vm159, %v152, %v154
    %v164 = vsel %vm159, %v154, %v156
    %v165 = vsel %vm159, %v156, %v158
    %172 = vst [vmem:[#allocation4 + $0x30] sm:$0xff] %v160
    %173 = vst [vmem:[#allocation4 + $0x38] sm:$0xff] %v161
    %174 = vst [vmem:[#allocation4 + $0x40] sm:$0xff] %v162
    %175 = vst [vmem:[#allocation4 + $0x48] sm:$0xff] %v163
    %176 = vst [vmem:[#allocation4 + $0x50] sm:$0xff] %v164
    %177 = vst [vmem:[#allocation4 + $0x58] sm:$0xff] %v165
    %v178 = vld [vmem:[#allocation5] sm:$0xff]
    %v179 = vld [vmem:[#allocation5 + $0x8] sm:$0xff]
    %v180 = vld [vmem:[#allocation5 + $0x10] sm:$0xff]
    %v181 = vld [vmem:[#allocation5 + $0x18] sm:$0xff]
    %v182 = vld [vmem:[#allocation5 + $0x20] sm:$0xff]
    %v183 = vld [vmem:[#allocation5 + $0x28] sm:$0xff]
    %v184 = vld [vmem:[#allocation5 + $0x30] sm:$0xff]
    %192 = vrot.lane.b32.xlu0 %v178, 17
    %v193 = vpop.permute.xlu0 %192
    %194 = vrot.lane.b32.xlu0 %v179, 17
    %v195 = vpop.permute.xlu0 %194
    %196 = vrot.lane.b32.xlu0 %v180, 17
    %v197 = vpop.permute.xlu0 %196
    %198 = vrot.lane.b32.xlu0 %v181, 17
    %v199 = vpop.permute.xlu0 %198
    %200 = vrot.lane.b32.xlu0 %v182, 17
    %v201 = vpop.permute.xlu0 %200
    %202 = vrot.lane.b32.xlu0 %v183, 17
    %v203 = vpop.permute.xlu0 %202
    %204 = vrot.lane.b32.xlu0 %v184, 17
    %v205 = vpop.permute.xlu0 %204
    %vm206 = vcmask 138240
    %v207 = vsel %vm206, %v193, %v195
    %v208 = vsel %vm206, %v195, %v197
    %v209 = vsel %vm206, %v197, %v199
    %v210 = vsel %vm206, %v199, %v201
    %v211 = vsel %vm206, %v201, %v203
    %v212 = vsel %vm206, %v203, %v205
    %219 = vst [vmem:[#allocation4 + $0x60] sm:$0xff] %v207
    %220 = vst [vmem:[#allocation4 + $0x68] sm:$0xff] %v208
    %221 = vst [vmem:[#allocation4 + $0x70] sm:$0xff] %v209
    %222 = vst [vmem:[#allocation4 + $0x78] sm:$0xff] %v210
    %223 = vst [vmem:[#allocation4 + $0x80] sm:$0xff] %v211
    %224 = vst [vmem:[#allocation4 + $0x88] sm:$0xff] %v212
    %v225 = vld [vmem:[#allocation5] sm:$0xff]
    %v226 = vld [vmem:[#allocation5 + $0x8] sm:$0xff]
    %v227 = vld [vmem:[#allocation5 + $0x10] sm:$0xff]
    %v228 = vld [vmem:[#allocation5 + $0x18] sm:$0xff]
    %v229 = vld [vmem:[#allocation5 + $0x20] sm:$0xff]
    %v230 = vld [vmem:[#allocation5 + $0x28] sm:$0xff]
    %v231 = vld [vmem:[#allocation5 + $0x30] sm:$0xff]
    %239 = vrot.lane.b32.xlu0 %v225, 1
    %v240 = vpop.permute.xlu0 %239
    %241 = vrot.lane.b32.xlu0 %v226, 1
    %v242 = vpop.permute.xlu0 %241
    %243 = vrot.lane.b32.xlu0 %v227, 1
    %v244 = vpop.permute.xlu0 %243
    %245 = vrot.lane.b32.xlu0 %v228, 1
    %v246 = vpop.permute.xlu0 %245
    %247 = vrot.lane.b32.xlu0 %v229, 1
    %v248 = vpop.permute.xlu0 %247
    %249 = vrot.lane.b32.xlu0 %v230, 1
    %v250 = vpop.permute.xlu0 %249
    %251 = vrot.lane.b32.xlu0 %v231, 1
    %v252 = vpop.permute.xlu0 %251
    %vm253 = vcmask 7168
    %v254 = vsel %vm253, %v240, %v242
    %v255 = vsel %vm253, %v242, %v244
    %v256 = vsel %vm253, %v244, %v246
    %v257 = vsel %vm253, %v246, %v248
    %v258 = vsel %vm253, %v248, %v250
    %v259 = vsel %vm253, %v250, %v252
    %266 = vst [vmem:[#allocation4 + $0x90] sm:$0xff] %v254
    %267 = vst [vmem:[#allocation4 + $0x98] sm:$0xff] %v255
    %268 = vst [vmem:[#allocation4 + $0xa0] sm:$0xff] %v256
    %269 = vst [vmem:[#allocation4 + $0xa8] sm:$0xff] %v257
    %270 = vst [vmem:[#allocation4 + $0xb0] sm:$0xff] %v258
    %271 = vst [vmem:[#allocation4 + $0xb8] sm:$0xff] %v259
    %v272 = vld [vmem:[#allocation5 + $0x8] sm:$0xff]
    %v273 = vld [vmem:[#allocation5 + $0x10] sm:$0xff]
    %v274 = vld [vmem:[#allocation5 + $0x18] sm:$0xff]
    %v275 = vld [vmem:[#allocation5 + $0x20] sm:$0xff]
    %v276 = vld [vmem:[#allocation5 + $0x28] sm:$0xff]
    %v277 = vld [vmem:[#allocation5 + $0x30] sm:$0xff]
    %278 = vst [vmem:[#allocation4 + $0xc0] sm:$0xff] %v272
    %279 = vst [vmem:[#allocation4 + $0xc8] sm:$0xff] %v273
    %280 = vst [vmem:[#allocation4 + $0xd0] sm:$0xff] %v274
    %281 = vst [vmem:[#allocation4 + $0xd8] sm:$0xff] %v275
    %282 = vst [vmem:[#allocation4 + $0xe0] sm:$0xff] %v276
    %283 = vst [vmem:[#allocation4 + $0xe8] sm:$0xff] %v277
    %v284 = vld [vmem:[#allocation5 + $0x8] sm:$0xff]
    %v285 = vld [vmem:[#allocation5 + $0x10] sm:$0xff]
    %v286 = vld [vmem:[#allocation5 + $0x18] sm:$0xff]
    %v287 = vld [vmem:[#allocation5 + $0x20] sm:$0xff]
    %v288 = vld [vmem:[#allocation5 + $0x28] sm:$0xff]
    %v289 = vld [vmem:[#allocation5 + $0x30] sm:$0xff]
    %v290 = vld [vmem:[#allocation5 + $0x38] sm:$0xff]
    %298 = vrot.lane.b32.xlu0 %v284, 127
    %v299 = vpop.permute.xlu0 %298
    %300 = vrot.lane.b32.xlu0 %v285, 127
    %v301 = vpop.permute.xlu0 %300
    %302 = vrot.lane.b32.xlu0 %v286, 127
    %v303 = vpop.permute.xlu0 %302
    %304 = vrot.lane.b32.xlu0 %v287, 127
    %v305 = vpop.permute.xlu0 %304
    %306 = vrot.lane.b32.xlu0 %v288, 127
    %v307 = vpop.permute.xlu0 %306
    %308 = vrot.lane.b32.xlu0 %v289, 127
    %v309 = vpop.permute.xlu0 %308
    %310 = vrot.lane.b32.xlu0 %v290, 127
    %v311 = vpop.permute.xlu0 %310
    %vm312 = vcmask 1039360
    %v313 = vsel %vm312, %v299, %v301
    %v314 = vsel %vm312, %v301, %v303
    %v315 = vsel %vm312, %v303, %v305
    %v316 = vsel %vm312, %v305, %v307
    %v317 = vsel %vm312, %v307, %v309
    %v318 = vsel %vm312, %v309, %v311
    %325 = vst [vmem:[#allocation4 + $0xf0] sm:$0xff] %v313
    %326 = vst [vmem:[#allocation4 + $0xf8] sm:$0xff] %v314
    %327 = vst [vmem:[#allocation4 + $0x100] sm:$0xff] %v315
    %328 = vst [vmem:[#allocation4 + $0x108] sm:$0xff] %v316
    %329 = vst [vmem:[#allocation4 + $0x110] sm:$0xff] %v317
    %330 = vst [vmem:[#allocation4 + $0x118] sm:$0xff] %v318
    %v331 = vld [vmem:[#allocation5 + $0x8] sm:$0xff]
    %v332 = vld [vmem:[#allocation5 + $0x10] sm:$0xff]
    %v333 = vld [vmem:[#allocation5 + $0x18] sm:$0xff]
    %v334 = vld [vmem:[#allocation5 + $0x20] sm:$0xff]
    %v335 = vld [vmem:[#allocation5 + $0x28] sm:$0xff]
    %v336 = vld [vmem:[#allocation5 + $0x30] sm:$0xff]
    %v337 = vld [vmem:[#allocation5 + $0x38] sm:$0xff]
    %345 = vrot.lane.b32.xlu0 %v331, 111
    %v346 = vpop.permute.xlu0 %345
    %347 = vrot.lane.b32.xlu0 %v332, 111
    %v348 = vpop.permute.xlu0 %347
    %349 = vrot.lane.b32.xlu0 %v333, 111
    %v350 = vpop.permute.xlu0 %349
    %351 = vrot.lane.b32.xlu0 %v334, 111
    %v352 = vpop.permute.xlu0 %351
    %353 = vrot.lane.b32.xlu0 %v335, 111
    %v354 = vpop.permute.xlu0 %353
    %355 = vrot.lane.b32.xlu0 %v336, 111
    %v356 = vpop.permute.xlu0 %355
    %357 = vrot.lane.b32.xlu0 %v337, 111
    %v358 = vpop.permute.xlu0 %357
    %vm359 = vcmask 908288
    %v360 = vsel %vm359, %v346, %v348
    %v361 = vsel %vm359, %v348, %v350
    %v362 = vsel %vm359, %v350, %v352
    %v363 = vsel %vm359, %v352, %v354
    %v364 = vsel %vm359, %v354, %v356
    %v365 = vsel %vm359, %v356, %v358
    %372 = vst [vmem:[#allocation4 + $0x120] sm:$0xff] %v360
    %373 = vst [vmem:[#allocation4 + $0x128] sm:$0xff] %v361
    %374 = vst [vmem:[#allocation4 + $0x130] sm:$0xff] %v362
    %375 = vst [vmem:[#allocation4 + $0x138] sm:$0xff] %v363
    %376 = vst [vmem:[#allocation4 + $0x140] sm:$0xff] %v364
    %377 = vst [vmem:[#allocation4 + $0x148] sm:$0xff] %v365
    %v378 = vld [vmem:[#allocation5 + $0x8] sm:$0xff]
    %v379 = vld [vmem:[#allocation5 + $0x10] sm:$0xff]
    %v380 = vld [vmem:[#allocation5 + $0x18] sm:$0xff]
    %v381 = vld [vmem:[#allocation5 + $0x20] sm:$0xff]
    %v382 = vld [vmem:[#allocation5 + $0x28] sm:$0xff]
    %v383 = vld [vmem:[#allocation5 + $0x30] sm:$0xff]
    %v384 = vld [vmem:[#allocation5 + $0x38] sm:$0xff]
    %392 = vrot.lane.b32.xlu0 %v378, 110
    %v393 = vpop.permute.xlu0 %392
    %394 = vrot.lane.b32.xlu0 %v379, 110
    %v395 = vpop.permute.xlu0 %394
    %396 = vrot.lane.b32.xlu0 %v380, 110
    %v397 = vpop.permute.xlu0 %396
    %398 = vrot.lane.b32.xlu0 %v381, 110
    %v399 = vpop.permute.xlu0 %398
    %400 = vrot.lane.b32.xlu0 %v382, 110
    %v401 = vpop.permute.xlu0 %400
    %402 = vrot.lane.b32.xlu0 %v383, 110
    %v403 = vpop.permute.xlu0 %402
    %404 = vrot.lane.b32.xlu0 %v384, 110
    %v405 = vpop.permute.xlu0 %404
    %vm406 = vcmask 900096
    %v407 = vsel %vm406, %v393, %v395
    %v408 = vsel %vm406, %v395, %v397
    %v409 = vsel %vm406, %v397, %v399
    %v410 = vsel %vm406, %v399, %v401
    %v411 = vsel %vm406, %v401, %v403
    %v412 = vsel %vm406, %v403, %v405
    %419 = vst [vmem:[#allocation4 + $0x150] sm:$0xff] %v407
    %420 = vst [vmem:[#allocation4 + $0x158] sm:$0xff] %v408
    %421 = vst [vmem:[#allocation4 + $0x160] sm:$0xff] %v409
    %422 = vst [vmem:[#allocation4 + $0x168] sm:$0xff] %v410
    %423 = vst [vmem:[#allocation4 + $0x170] sm:$0xff] %v411
    %424 = vst [vmem:[#allocation4 + $0x178] sm:$0xff] %v412
    %v425 = vld [vmem:[#allocation5 + $0x8] sm:$0xff]
    %v426 = vld [vmem:[#allocation5 + $0x10] sm:$0xff]
    %v427 = vld [vmem:[#allocation5 + $0x18] sm:$0xff]
    %v428 = vld [vmem:[#allocation5 + $0x20] sm:$0xff]
    %v429 = vld [vmem:[#allocation5 + $0x28] sm:$0xff]
    %v430 = vld [vmem:[#allocation5 + $0x30] sm:$0xff]
    %v431 = vld [vmem:[#allocation5 + $0x38] sm:$0xff]
    %439 = vrot.lane.b32.xlu0 %v425, 109
    %v440 = vpop.permute.xlu0 %439
    %441 = vrot.lane.b32.xlu0 %v426, 109
    %v442 = vpop.permute.xlu0 %441
    %443 = vrot.lane.b32.xlu0 %v427, 109
    %v444 = vpop.permute.xlu0 %443
    %445 = vrot.lane.b32.xlu0 %v428, 109
    %v446 = vpop.permute.xlu0 %445
    %447 = vrot.lane.b32.xlu0 %v429, 109
    %v448 = vpop.permute.xlu0 %447
    %449 = vrot.lane.b32.xlu0 %v430, 109
    %v450 = vpop.permute.xlu0 %449
    %451 = vrot.lane.b32.xlu0 %v431, 109
    %v452 = vpop.permute.xlu0 %451
    %vm453 = vcmask 891904
    %v454 = vsel %vm453, %v440, %v442
    %v455 = vsel %vm453, %v442, %v444
    %v456 = vsel %vm453, %v444, %v446
    %v457 = vsel %vm453, %v446, %v448
    %v458 = vsel %vm453, %v448, %v450
    %v459 = vsel %vm453, %v450, %v452
    %466 = vst [vmem:[#allocation4 + $0x180] sm:$0xff] %v454
    %467 = vst [vmem:[#allocation4 + $0x188] sm:$0xff] %v455
    %468 = vst [vmem:[#allocation4 + $0x190] sm:$0xff] %v456
    %469 = vst [vmem:[#allocation4 + $0x198] sm:$0xff] %v457
    %470 = vst [vmem:[#allocation4 + $0x1a0] sm:$0xff] %v458
    %471 = vst [vmem:[#allocation4 + $0x1a8] sm:$0xff] %v459
    %v472 = vld [vmem:[%s2] sm:$0xff]
    %v473 = vld [vmem:[#allocation4] sm:$0xff]
    %v474 = vld [vmem:[#allocation4 + $0x8] sm:$0xff]
    %v475 = vld [vmem:[#allocation4 + $0x10] sm:$0xff]
    %v476 = vld [vmem:[#allocation4 + $0x18] sm:$0xff]
    %v477 = vld [vmem:[#allocation4 + $0x20] sm:$0xff]
    %v478 = vld [vmem:[#allocation4 + $0x28] sm:$0xff]
    %v479 = vld [vmem:[#allocation4 + $0x30] sm:$0xff]
    %v480 = vld [vmem:[#allocation4 + $0x38] sm:$0xff]
    %v481 = vld [vmem:[#allocation4 + $0x40] sm:$0xff]
    %v482 = vld [vmem:[#allocation4 + $0x48] sm:$0xff]
    %v483 = vld [vmem:[#allocation4 + $0x50] sm:$0xff]
    %v484 = vld [vmem:[#allocation4 + $0x58] sm:$0xff]
    %v485 = vld [vmem:[#allocation4 + $0x60] sm:$0xff]
    %v486 = vld [vmem:[#allocation4 + $0x68] sm:$0xff]
    %v487 = vld [vmem:[#allocation4 + $0x70] sm:$0xff]
    %v488 = vld [vmem:[#allocation4 + $0x78] sm:$0xff]
    %v489 = vld [vmem:[#allocation4 + $0x80] sm:$0xff]
    %v490 = vld [vmem:[#allocation4 + $0x88] sm:$0xff]
    %v491 = vld [vmem:[#allocation4 + $0x90] sm:$0xff]
    %v492 = vld [vmem:[#allocation4 + $0x98] sm:$0xff]
    %v493 = vld [vmem:[#allocation4 + $0xa0] sm:$0xff]
    %v494 = vld [vmem:[#allocation4 + $0xa8] sm:$0xff]
    %v495 = vld [vmem:[#allocation4 + $0xb0] sm:$0xff]
    %v496 = vld [vmem:[#allocation4 + $0xb8] sm:$0xff]
    %v497 = vld [vmem:[#allocation4 + $0xc0] sm:$0xff]
    %v498 = vld [vmem:[#allocation4 + $0xc8] sm:$0xff]
    %v499 = vld [vmem:[#allocation4 + $0xd0] sm:$0xff]
    %v500 = vld [vmem:[#allocation4 + $0xd8] sm:$0xff]
    %v501 = vld [vmem:[#allocation4 + $0xe0] sm:$0xff]
    %v502 = vld [vmem:[#allocation4 + $0xe8] sm:$0xff]
    %v503 = vld [vmem:[#allocation4 + $0xf0] sm:$0xff]
    %v504 = vld [vmem:[#allocation4 + $0xf8] sm:$0xff]
    %v505 = vld [vmem:[#allocation4 + $0x100] sm:$0xff]
    %v506 = vld [vmem:[#allocation4 + $0x108] sm:$0xff]
    %v507 = vld [vmem:[#allocation4 + $0x110] sm:$0xff]
    %v508 = vld [vmem:[#allocation4 + $0x118] sm:$0xff]
    %v509 = vld [vmem:[#allocation4 + $0x120] sm:$0xff]
    %v510 = vld [vmem:[#allocation4 + $0x128] sm:$0xff]
    %v511 = vld [vmem:[#allocation4 + $0x130] sm:$0xff]
    %v512 = vld [vmem:[#allocation4 + $0x138] sm:$0xff]
    %v513 = vld [vmem:[#allocation4 + $0x140] sm:$0xff]
    %v514 = vld [vmem:[#allocation4 + $0x148] sm:$0xff]
    %v515 = vld [vmem:[#allocation4 + $0x150] sm:$0xff]
    %v516 = vld [vmem:[#allocation4 + $0x158] sm:$0xff]
    %v517 = vld [vmem:[#allocation4 + $0x160] sm:$0xff]
    %v518 = vld [vmem:[#allocation4 + $0x168] sm:$0xff]
    %v519 = vld [vmem:[#allocation4 + $0x170] sm:$0xff]
    %v520 = vld [vmem:[#allocation4 + $0x178] sm:$0xff]
    %v521 = vld [vmem:[#allocation4 + $0x180] sm:$0xff]
    %v522 = vld [vmem:[#allocation4 + $0x188] sm:$0xff]
    %v523 = vld [vmem:[#allocation4 + $0x190] sm:$0xff]
    %v524 = vld [vmem:[#allocation4 + $0x198] sm:$0xff]
    %v525 = vld [vmem:[#allocation4 + $0x1a0] sm:$0xff]
    %v526 = vld [vmem:[#allocation4 + $0x1a8] sm:$0xff]
    %v527 = vld [vmem:[%s3] sm:$0xff]
    %529 = vset.pattern.permute.xlu0 0
    %530 = vperm.xlu0 %529, %v527
    %v531 = vpop.permute.xlu0 %530
    %vm533 = vcmask 588800
    %v535 = vsel %vm533, %v472, 0
    %537 = vmatprep.subr.mxu0 %v474
    %538 = vmatpush1.msra.mxu0 %v473
    %539 = vmatprep.subr.mxu0 %v480
    %540 = vmatpush1.msra.mxu0 %v479
    %541 = vmatprep.subr.mxu0 %v486
    %542 = vmatpush1.msra.mxu0 %v485
    %543 = vmatprep.subr.mxu0 %v492
    %544 = vmatpush1.msra.mxu0 %v491
    %545 = vmatprep.subr.mxu0 %v498
    %546 = vmatpush1.msra.mxu0 %v497
    %547 = vmatprep.subr.mxu0 %v504
    %548 = vmatpush1.msra.mxu0 %v503
    %549 = vmatprep.subr.mxu0 %v510
    %550 = vmatpush1.msra.mxu0 %v509
    %551 = vmatprep.subr.mxu0 %v516
    %552 = vmatpush1.msra.mxu0 %v515
    %553 = vmatprep.subr.mxu0 %v522
    %554 = vmatpush1.msra.mxu0 %v521
    %555 = vmatprep.subr.mxu0 0.0
    %556 = vmatpush1.msra.mxu0 0.0
    %557 = vmatprep.subr.mxu0 0.0
    %558 = vmatpush1.msra.mxu0 0.0
    %559 = vmatprep.subr.mxu0 0.0
    %560 = vmatpush1.msra.mxu0 0.0
    %561 = vmatprep.subr.mxu0 0.0
    %562 = vmatpush1.msra.mxu0 0.0
    %563 = vmatprep.subr.mxu0 0.0
    %564 = vmatpush1.msra.mxu0 0.0
    %565 = vmatprep.subr.mxu0 0.0
    %566 = vmatpush1.msra.mxu0 0.0
    %567 = vmatprep.subr.mxu0 0.0
    %568 = vmatpush1.msra.mxu0 0.0
    %569 = vmatprep.subr.mxu0 0.0
    %570 = vmatpush1.msra.mxu0 0.0
    %571 = vmatprep.subr.mxu0 0.0
    %572 = vmatpush1.msra.mxu0 0.0
    %573 = vmatprep.subr.mxu0 0.0
    %574 = vmatpush1.msra.mxu0 0.0
    %575 = vmatprep.subr.mxu0 0.0
    %576 = vmatpush1.msra.mxu0 0.0
    %577 = vmatprep.subr.mxu0 0.0
    %578 = vmatpush1.msra.mxu0 0.0
    %579 = vmatprep.subr.mxu0 0.0
    %580 = vmatpush1.msra.mxu0 0.0
    %581 = vmatprep.subr.mxu0 0.0
    %582 = vmatpush1.msra.mxu0 0.0
    %583 = vmatprep.subr.mxu0 0.0
    %584 = vmatpush1.msra.mxu0 0.0
    %585 = vmatprep.subr.mxu0 0.0
    %586 = vmatpush1.msra.mxu0 0.0
    %587 = vmatprep.subr.mxu0 0.0
    %588 = vmatpush1.msra.mxu0 0.0
    %589 = vmatprep.subr.mxu0 0.0
    %590 = vmatpush1.msra.mxu0 0.0
    %591 = vmatprep.subr.mxu0 0.0
    %592 = vmatpush1.msra.mxu0 0.0
    %593 = vmatprep.subr.mxu0 0.0
    %594 = vmatpush1.msra.mxu0 0.0
    %595 = vmatprep.subr.mxu0 0.0
    %596 = vmatpush1.msra.mxu0 0.0
    %597 = vmatprep.subr.mxu0 0.0
    %598 = vmatpush1.msra.mxu0 0.0
    %599 = vmatprep.subr.mxu0 0.0
    %600 = vmatpush1.msra.mxu0 0.0
    %601 = vmatprep.mubr.f32.mxu0 0.0
    %602 = vmatmul.mubr.f32.gmra.mrb[0].mxu0 %v535
    %v603 = vpop.f32.mrb[0].mxu0
    %v604 = vadd.f32 %v531, %v603
    %v605 = vpop.f32.mrb[0].mxu0
    %v606 = vadd.f32 %v531, %v605
    %607 = vdwg.mxu0
    %608 = vmatprep.subr.mxu0 %v476
    %609 = vmatpush1.msra.mxu0 %v475
    %610 = vmatprep.subr.mxu0 %v482
    %611 = vmatpush1.msra.mxu0 %v481
    %612 = vmatprep.subr.mxu0 %v488
    %613 = vmatpush1.msra.mxu0 %v487
    %614 = vmatprep.subr.mxu0 %v494
    %615 = vmatpush1.msra.mxu0 %v493
    %616 = vmatprep.subr.mxu0 %v500
    %617 = vmatpush1.msra.mxu0 %v499
    %618 = vmatprep.subr.mxu0 %v506
    %619 = vmatpush1.msra.mxu0 %v505
    %620 = vmatprep.subr.mxu0 %v512
    %621 = vmatpush1.msra.mxu0 %v511
    %622 = vmatprep.subr.mxu0 %v518
    %623 = vmatpush1.msra.mxu0 %v517
    %624 = vmatprep.subr.mxu0 %v524
    %625 = vmatpush1.msra.mxu0 %v523
    %626 = vmatprep.subr.mxu0 0.0
    %627 = vmatpush1.msra.mxu0 0.0
    %628 = vmatprep.subr.mxu0 0.0
    %629 = vmatpush1.msra.mxu0 0.0
    %630 = vmatprep.subr.mxu0 0.0
    %631 = vmatpush1.msra.mxu0 0.0
    %632 = vmatprep.subr.mxu0 0.0
    %633 = vmatpush1.msra.mxu0 0.0
    %634 = vmatprep.subr.mxu0 0.0
    %635 = vmatpush1.msra.mxu0 0.0
    %636 = vmatprep.subr.mxu0 0.0
    %637 = vmatpush1.msra.mxu0 0.0
    %638 = vmatprep.subr.mxu0 0.0
    %639 = vmatpush1.msra.mxu0 0.0
    %640 = vmatprep.subr.mxu0 0.0
    %641 = vmatpush1.msra.mxu0 0.0
    %642 = vmatprep.subr.mxu0 0.0
    %643 = vmatpush1.msra.mxu0 0.0
    %644 = vmatprep.subr.mxu0 0.0
    %645 = vmatpush1.msra.mxu0 0.0
    %646 = vmatprep.subr.mxu0 0.0
    %647 = vmatpush1.msra.mxu0 0.0
    %648 = vmatprep.subr.mxu0 0.0
    %649 = vmatpush1.msra.mxu0 0.0
    %650 = vmatprep.subr.mxu0 0.0
    %651 = vmatpush1.msra.mxu0 0.0
    %652 = vmatprep.subr.mxu0 0.0
    %653 = vmatpush1.msra.mxu0 0.0
    %654 = vmatprep.subr.mxu0 0.0
    %655 = vmatpush1.msra.mxu0 0.0
    %656 = vmatprep.subr.mxu0 0.0
    %657 = vmatpush1.msra.mxu0 0.0
    %658 = vmatprep.subr.mxu0 0.0
    %659 = vmatpush1.msra.mxu0 0.0
    %660 = vmatprep.subr.mxu0 0.0
    %661 = vmatpush1.msra.mxu0 0.0
    %662 = vmatprep.subr.mxu0 0.0
    %663 = vmatpush1.msra.mxu0 0.0
    %664 = vmatprep.subr.mxu0 0.0
    %665 = vmatpush1.msra.mxu0 0.0
    %666 = vmatprep.subr.mxu0 0.0
    %667 = vmatpush1.msra.mxu0 0.0
    %668 = vmatprep.subr.mxu0 0.0
    %669 = vmatpush1.msra.mxu0 0.0
    %670 = vmatprep.subr.mxu0 0.0
    %671 = vmatpush1.msra.mxu0 0.0
    %672 = vmatprep.mubr.f32.mxu0 0.0
    %673 = vmatmul.mubr.f32.gmra.mrb[0].mxu0 %v535
    %v674 = vpop.f32.mrb[0].mxu0
    %v675 = vadd.f32 %v531, %v674
    %v676 = vpop.f32.mrb[0].mxu0
    %v677 = vadd.f32 %v531, %v676
    %678 = vdwg.mxu0
    %679 = vmatprep.subr.mxu0 %v478
    %680 = vmatpush1.msra.mxu0 %v477
    %681 = vmatprep.subr.mxu0 %v484
    %682 = vmatpush1.msra.mxu0 %v483
    %683 = vmatprep.subr.mxu0 %v490
    %684 = vmatpush1.msra.mxu0 %v489
    %685 = vmatprep.subr.mxu0 %v496
    %686 = vmatpush1.msra.mxu0 %v495
    %687 = vmatprep.subr.mxu0 %v502
    %688 = vmatpush1.msra.mxu0 %v501
    %689 = vmatprep.subr.mxu0 %v508
    %690 = vmatpush1.msra.mxu0 %v507
    %691 = vmatprep.subr.mxu0 %v514
    %692 = vmatpush1.msra.mxu0 %v513
    %693 = vmatprep.subr.mxu0 %v520
    %694 = vmatpush1.msra.mxu0 %v519
    %695 = vmatprep.subr.mxu0 %v526
    %696 = vmatpush1.msra.mxu0 %v525
    %697 = vmatprep.subr.mxu0 0.0
    %698 = vmatpush1.msra.mxu0 0.0
    %699 = vmatprep.subr.mxu0 0.0
    %700 = vmatpush1.msra.mxu0 0.0
    %701 = vmatprep.subr.mxu0 0.0
    %702 = vmatpush1.msra.mxu0 0.0
    %703 = vmatprep.subr.mxu0 0.0
    %704 = vmatpush1.msra.mxu0 0.0
    %705 = vmatprep.subr.mxu0 0.0
    %706 = vmatpush1.msra.mxu0 0.0
    %707 = vmatprep.subr.mxu0 0.0
    %708 = vmatpush1.msra.mxu0 0.0
    %709 = vmatprep.subr.mxu0 0.0
    %710 = vmatpush1.msra.mxu0 0.0
    %711 = vmatprep.subr.mxu0 0.0
    %712 = vmatpush1.msra.mxu0 0.0
    %713 = vmatprep.subr.mxu0 0.0
    %714 = vmatpush1.msra.mxu0 0.0
    %715 = vmatprep.subr.mxu0 0.0
    %716 = vmatpush1.msra.mxu0 0.0
    %717 = vmatprep.subr.mxu0 0.0
    %718 = vmatpush1.msra.mxu0 0.0
    %719 = vmatprep.subr.mxu0 0.0
    %720 = vmatpush1.msra.mxu0 0.0
    %721 = vmatprep.subr.mxu0 0.0
    %722 = vmatpush1.msra.mxu0 0.0
    %723 = vmatprep.subr.mxu0 0.0
    %724 = vmatpush1.msra.mxu0 0.0
    %725 = vmatprep.subr.mxu0 0.0
    %726 = vmatpush1.msra.mxu0 0.0
    %727 = vmatprep.subr.mxu0 0.0
    %728 = vmatpush1.msra.mxu0 0.0
    %729 = vmatprep.subr.mxu0 0.0
    %730 = vmatpush1.msra.mxu0 0.0
    %731 = vmatprep.subr.mxu0 0.0
    %732 = vmatpush1.msra.mxu0 0.0
    %733 = vmatprep.subr.mxu0 0.0
    %734 = vmatpush1.msra.mxu0 0.0
    %735 = vmatprep.subr.mxu0 0.0
    %736 = vmatpush1.msra.mxu0 0.0
    %737 = vmatprep.subr.mxu0 0.0
    %738 = vmatpush1.msra.mxu0 0.0
    %739 = vmatprep.subr.mxu0 0.0
    %740 = vmatpush1.msra.mxu0 0.0
    %741 = vmatprep.subr.mxu0 0.0
    %742 = vmatpush1.msra.mxu0 0.0
    %743 = vmatprep.mubr.f32.mxu0 0.0
    %744 = vmatmul.mubr.f32.gmra.mrb[0].mxu0 %v535
    %v745 = vpop.f32.mrb[0].mxu0
    %v746 = vadd.f32 %v531, %v745
    %v747 = vpop.f32.mrb[0].mxu0
    %v748 = vadd.f32 %v531, %v747
    %749 = vdwg.mxu0
    %v750 = vsel %vm74, %v604, 0.0
    %v751 = vsel %vm75, %v606, 0.0
    %v752 = vsel %vm76, %v675, 0.0
    %v753 = vsel %vm77, %v677, 0.0
    %v754 = vsel %vm78, %v746, 0.0
    %v755 = vsel %vm79, %v748, 0.0
    %v756 = vmin.f32 %v750, 20.0
    %v757 = vmin.f32 %v751, 20.0
    %v758 = vmin.f32 %v752, 20.0
    %v759 = vmin.f32 %v753, 20.0
    %v760 = vmin.f32 %v754, 20.0
    %v761 = vmin.f32 %v755, 20.0
    %v762 = vmul.f32 %v756, 1.442695
    %v763 = vpow.pop %v762
    %v764 = vmul.f32 %v757, 1.442695
    %v765 = vpow.pop %v764
    %v766 = vmul.f32 %v758, 1.442695
    %v767 = vpow.pop %v766
    %v768 = vmul.f32 %v759, 1.442695
    %v769 = vpow.pop %v768
    %v770 = vmul.f32 %v760, 1.442695
    %v771 = vpow.pop %v770
    %v772 = vmul.f32 %v761, 1.442695
    %v773 = vpow.pop %v772
    %v774 = vadd.f32 %v763, 2.0
    %v775 = vadd.f32 %v765, 2.0
    %v776 = vadd.f32 %v767, 2.0
    %v777 = vadd.f32 %v769, 2.0
    %v778 = vadd.f32 %v771, 2.0
    %v779 = vadd.f32 %v773, 2.0
    %v780 = vmul.f32 %v763, %v774
    %v781 = vmul.f32 %v765, %v775
    %v782 = vmul.f32 %v767, %v776
    %v783 = vmul.f32 %v769, %v777
    %v784 = vmul.f32 %v771, %v778
    %v785 = vmul.f32 %v773, %v779
    %v786 = vadd.f32 %v780, 2.0
    %v787 = vadd.f32 %v781, 2.0
    %v788 = vadd.f32 %v782, 2.0
    %v789 = vadd.f32 %v783, 2.0
    %v790 = vadd.f32 %v784, 2.0
    %v791 = vadd.f32 %v785, 2.0
    %v792 = vrcp.pop %v786
    %v793 = vrcp.pop %v787
    %v794 = vrcp.pop %v788
    %v795 = vrcp.pop %v789
    %v796 = vrcp.pop %v790
    %v797 = vrcp.pop %v791
    %v798 = vmul.f32 %v780, %v792
    %v799 = vmul.f32 %v781, %v793
    %v800 = vmul.f32 %v782, %v794
    %v801 = vmul.f32 %v783, %v795
    %v802 = vmul.f32 %v784, %v796
    %v803 = vmul.f32 %v785, %v797
    %v804 = vmul.f32 %v750, %v798
    %v805 = vmul.f32 %v751, %v799
    %v806 = vmul.f32 %v752, %v800
    %v807 = vmul.f32 %v753, %v801
    %v808 = vmul.f32 %v754, %v802
    %v809 = vmul.f32 %v755, %v803
    %810 = vst [vmem:[#allocation2 + $0x8] sm:$0xff] %v804
    %811 = vst [vmem:[#allocation2 + $0x10] sm:$0xff] %v805
    %812 = vst [vmem:[#allocation2 + $0x18] sm:$0xff] %v806
    %813 = vst [vmem:[#allocation2 + $0x20] sm:$0xff] %v807
    %814 = vst [vmem:[#allocation2 + $0x28] sm:$0xff] %v808
    %815 = vst [vmem:[#allocation2 + $0x30] sm:$0xff] %v809
    %v816 = vld [vmem:[#allocation2] sm:$0xff]
    %v817 = vld [vmem:[#allocation2 + $0x8] sm:$0xff]
    %v818 = vld [vmem:[#allocation2 + $0x10] sm:$0xff]
    %v819 = vld [vmem:[#allocation2 + $0x18] sm:$0xff]
    %v820 = vld [vmem:[#allocation2 + $0x20] sm:$0xff]
    %v821 = vld [vmem:[#allocation2 + $0x28] sm:$0xff]
    %v822 = vld [vmem:[#allocation2 + $0x30] sm:$0xff]
    %830 = vrot.lane.b32.xlu0 %v816, 19
    %v831 = vpop.permute.xlu0 %830
    %832 = vrot.lane.b32.xlu0 %v817, 19
    %v833 = vpop.permute.xlu0 %832
    %834 = vrot.lane.b32.xlu0 %v818, 19
    %v835 = vpop.permute.xlu0 %834
    %836 = vrot.lane.b32.xlu0 %v819, 19
    %v837 = vpop.permute.xlu0 %836
    %838 = vrot.lane.b32.xlu0 %v820, 19
    %v839 = vpop.permute.xlu0 %838
    %840 = vrot.lane.b32.xlu0 %v821, 19
    %v841 = vpop.permute.xlu0 %840
    %842 = vrot.lane.b32.xlu0 %v822, 19
    %v843 = vpop.permute.xlu0 %842
    %v844 = vsel %vm112, %v831, %v833
    %v845 = vsel %vm112, %v833, %v835
    %v846 = vsel %vm112, %v835, %v837
    %v847 = vsel %vm112, %v837, %v839
    %v848 = vsel %vm112, %v839, %v841
    %v849 = vsel %vm112, %v841, %v843
    %856 = vst [vmem:[#allocation4] sm:$0xff] %v844
    %857 = vst [vmem:[#allocation4 + $0x8] sm:$0xff] %v845
    %858 = vst [vmem:[#allocation4 + $0x10] sm:$0xff] %v846
    %859 = vst [vmem:[#allocation4 + $0x18] sm:$0xff] %v847
    %860 = vst [vmem:[#allocation4 + $0x20] sm:$0xff] %v848
    %861 = vst [vmem:[#allocation4 + $0x28] sm:$0xff] %v849
    %v862 = vld [vmem:[#allocation2] sm:$0xff]
    %v863 = vld [vmem:[#allocation2 + $0x8] sm:$0xff]
    %v864 = vld [vmem:[#allocation2 + $0x10] sm:$0xff]
    %v865 = vld [vmem:[#allocation2 + $0x18] sm:$0xff]
    %v866 = vld [vmem:[#allocation2 + $0x20] sm:$0xff]
    %v867 = vld [vmem:[#allocation2 + $0x28] sm:$0xff]
    %v868 = vld [vmem:[#allocation2 + $0x30] sm:$0xff]
    %876 = vrot.lane.b32.xlu0 %v862, 18
    %v877 = vpop.permute.xlu0 %876
    %878 = vrot.lane.b32.xlu0 %v863, 18
    %v879 = vpop.permute.xlu0 %878
    %880 = vrot.lane.b32.xlu0 %v864, 18
    %v881 = vpop.permute.xlu0 %880
    %882 = vrot.lane.b32.xlu0 %v865, 18
    %v883 = vpop.permute.xlu0 %882
    %884 = vrot.lane.b32.xlu0 %v866, 18
    %v885 = vpop.permute.xlu0 %884
    %886 = vrot.lane.b32.xlu0 %v867, 18
    %v887 = vpop.permute.xlu0 %886
    %888 = vrot.lane.b32.xlu0 %v868, 18
    %v889 = vpop.permute.xlu0 %888
    %v890 = vsel %vm159, %v877, %v879
    %v891 = vsel %vm159, %v879, %v881
    %v892 = vsel %vm159, %v881, %v883
    %v893 = vsel %vm159, %v883, %v885
    %v894 = vsel %vm159, %v885, %v887
    %v895 = vsel %vm159, %v887, %v889
    %902 = vst [vmem:[#allocation4 + $0x30] sm:$0xff] %v890
    %903 = vst [vmem:[#allocation4 + $0x38] sm:$0xff] %v891
    %904 = vst [vmem:[#allocation4 + $0x40] sm:$0xff] %v892
    %905 = vst [vmem:[#allocation4 + $0x48] sm:$0xff] %v893
    %906 = vst [vmem:[#allocation4 + $0x50] sm:$0xff] %v894
    %907 = vst [vmem:[#allocation4 + $0x58] sm:$0xff] %v895
    %v908 = vld [vmem:[#allocation2] sm:$0xff]
    %v909 = vld [vmem:[#allocation2 + $0x8] sm:$0xff]
    %v910 = vld [vmem:[#allocation2 + $0x10] sm:$0xff]
    %v911 = vld [vmem:[#allocation2 + $0x18] sm:$0xff]
    %v912 = vld [vmem:[#allocation2 + $0x20] sm:$0xff]
    %v913 = vld [vmem:[#allocation2 + $0x28] sm:$0xff]
    %v914 = vld [vmem:[#allocation2 + $0x30] sm:$0xff]
    %922 = vrot.lane.b32.xlu0 %v908, 17
    %v923 = vpop.permute.xlu0 %922
    %924 = vrot.lane.b32.xlu0 %v909, 17
    %v925 = vpop.permute.xlu0 %924
    %926 = vrot.lane.b32.xlu0 %v910, 17
    %v927 = vpop.permute.xlu0 %926
    %928 = vrot.lane.b32.xlu0 %v911, 17
    %v929 = vpop.permute.xlu0 %928
    %930 = vrot.lane.b32.xlu0 %v912, 17
    %v931 = vpop.permute.xlu0 %930
    %932 = vrot.lane.b32.xlu0 %v913, 17
    %v933 = vpop.permute.xlu0 %932
    %934 = vrot.lane.b32.xlu0 %v914, 17
    %v935 = vpop.permute.xlu0 %934
    %v936 = vsel %vm206, %v923, %v925
    %v937 = vsel %vm206, %v925, %v927
    %v938 = vsel %vm206, %v927, %v929
    %v939 = vsel %vm206, %v929, %v931
    %v940 = vsel %vm206, %v931, %v933
    %v941 = vsel %vm206, %v933, %v935
    %948 = vst [vmem:[#allocation4 + $0x60] sm:$0xff] %v936
    %949 = vst [vmem:[#allocation4 + $0x68] sm:$0xff] %v937
    %950 = vst [vmem:[#allocation4 + $0x70] sm:$0xff] %v938
    %951 = vst [vmem:[#allocation4 + $0x78] sm:$0xff] %v939
    %952 = vst [vmem:[#allocation4 + $0x80] sm:$0xff] %v940
    %953 = vst [vmem:[#allocation4 + $0x88] sm:$0xff] %v941
    %v954 = vld [vmem:[#allocation2] sm:$0xff]
    %v955 = vld [vmem:[#allocation2 + $0x8] sm:$0xff]
    %v956 = vld [vmem:[#allocation2 + $0x10] sm:$0xff]
    %v957 = vld [vmem:[#allocation2 + $0x18] sm:$0xff]
    %v958 = vld [vmem:[#allocation2 + $0x20] sm:$0xff]
    %v959 = vld [vmem:[#allocation2 + $0x28] sm:$0xff]
    %v960 = vld [vmem:[#allocation2 + $0x30] sm:$0xff]
    %968 = vrot.lane.b32.xlu0 %v954, 1
    %v969 = vpop.permute.xlu0 %968
    %970 = vrot.lane.b32.xlu0 %v955, 1
    %v971 = vpop.permute.xlu0 %970
    %972 = vrot.lane.b32.xlu0 %v956, 1
    %v973 = vpop.permute.xlu0 %972
    %974 = vrot.lane.b32.xlu0 %v957, 1
    %v975 = vpop.permute.xlu0 %974
    %976 = vrot.lane.b32.xlu0 %v958, 1
    %v977 = vpop.permute.xlu0 %976
    %978 = vrot.lane.b32.xlu0 %v959, 1
    %v979 = vpop.permute.xlu0 %978
    %980 = vrot.lane.b32.xlu0 %v960, 1
    %v981 = vpop.permute.xlu0 %980
    %v982 = vsel %vm253, %v969, %v971
    %v983 = vsel %vm253, %v971, %v973
    %v984 = vsel %vm253, %v973, %v975
    %v985 = vsel %vm253, %v975, %v977
    %v986 = vsel %vm253, %v977, %v979
    %v987 = vsel %vm253, %v979, %v981
    %994 = vst [vmem:[#allocation4 + $0x90] sm:$0xff] %v982
    %995 = vst [vmem:[#allocation4 + $0x98] sm:$0xff] %v983
    %996 = vst [vmem:[#allocation4 + $0xa0] sm:$0xff] %v984
    %997 = vst [vmem:[#allocation4 + $0xa8] sm:$0xff] %v985
    %998 = vst [vmem:[#allocation4 + $0xb0] sm:$0xff] %v986
    %999 = vst [vmem:[#allocation4 + $0xb8] sm:$0xff] %v987
    %v1000 = vld [vmem:[#allocation2 + $0x8] sm:$0xff]
    %v1001 = vld [vmem:[#allocation2 + $0x10] sm:$0xff]
    %v1002 = vld [vmem:[#allocation2 + $0x18] sm:$0xff]
    %v1003 = vld [vmem:[#allocation2 + $0x20] sm:$0xff]
    %v1004 = vld [vmem:[#allocation2 + $0x28] sm:$0xff]
    %v1005 = vld [vmem:[#allocation2 + $0x30] sm:$0xff]
    %1006 = vst [vmem:[#allocation4 + $0xc0] sm:$0xff] %v1000
    %1007 = vst [vmem:[#allocation4 + $0xc8] sm:$0xff] %v1001
    %1008 = vst [vmem:[#allocation4 + $0xd0] sm:$0xff] %v1002
    %1009 = vst [vmem:[#allocation4 + $0xd8] sm:$0xff] %v1003
    %1010 = vst [vmem:[#allocation4 + $0xe0] sm:$0xff] %v1004
    %1011 = vst [vmem:[#allocation4 + $0xe8] sm:$0xff] %v1005
    %v1012 = vld [vmem:[#allocation2 + $0x8] sm:$0xff]
    %v1013 = vld [vmem:[#allocation2 + $0x10] sm:$0xff]
    %v1014 = vld [vmem:[#allocation2 + $0x18] sm:$0xff]
    %v1015 = vld [vmem:[#allocation2 + $0x20] sm:$0xff]
    %v1016 = vld [vmem:[#allocation2 + $0x28] sm:$0xff]
    %v1017 = vld [vmem:[#allocation2 + $0x30] sm:$0xff]
    %v1018 = vld [vmem:[#allocation2 + $0x38] sm:$0xff]
    %1026 = vrot.lane.b32.xlu0 %v1012, 127
    %v1027 = vpop.permute.xlu0 %1026
    %1028 = vrot.lane.b32.xlu0 %v1013, 127
    %v1029 = vpop.permute.xlu0 %1028
    %1030 = vrot.lane.b32.xlu0 %v1014, 127
    %v1031 = vpop.permute.xlu0 %1030
    %1032 = vrot.lane.b32.xlu0 %v1015, 127
    %v1033 = vpop.permute.xlu0 %1032
    %1034 = vrot.lane.b32.xlu0 %v1016, 127
    %v1035 = vpop.permute.xlu0 %1034
    %1036 = vrot.lane.b32.xlu0 %v1017, 127
    %v1037 = vpop.permute.xlu0 %1036
    %1038 = vrot.lane.b32.xlu0 %v1018, 127
    %v1039 = vpop.permute.xlu0 %1038
    %v1040 = vsel %vm312, %v1027, %v1029
    %v1041 = vsel %vm312, %v1029, %v1031
    %v1042 = vsel %vm312, %v1031, %v1033
    %v1043 = vsel %vm312, %v1033, %v1035
    %v1044 = vsel %vm312, %v1035, %v1037
    %v1045 = vsel %vm312, %v1037, %v1039
    %1052 = vst [vmem:[#allocation4 + $0xf0] sm:$0xff] %v1040
    %1053 = vst [vmem:[#allocation4 + $0xf8] sm:$0xff] %v1041
    %1054 = vst [vmem:[#allocation4 + $0x100] sm:$0xff] %v1042
    %1055 = vst [vmem:[#allocation4 + $0x108] sm:$0xff] %v1043
    %1056 = vst [vmem:[#allocation4 + $0x110] sm:$0xff] %v1044
    %1057 = vst [vmem:[#allocation4 + $0x118] sm:$0xff] %v1045
    %v1058 = vld [vmem:[#allocation2 + $0x8] sm:$0xff]
    %v1059 = vld [vmem:[#allocation2 + $0x10] sm:$0xff]
    %v1060 = vld [vmem:[#allocation2 + $0x18] sm:$0xff]
    %v1061 = vld [vmem:[#allocation2 + $0x20] sm:$0xff]
    %v1062 = vld [vmem:[#allocation2 + $0x28] sm:$0xff]
    %v1063 = vld [vmem:[#allocation2 + $0x30] sm:$0xff]
    %v1064 = vld [vmem:[#allocation2 + $0x38] sm:$0xff]
    %1072 = vrot.lane.b32.xlu0 %v1058, 111
    %v1073 = vpop.permute.xlu0 %1072
    %1074 = vrot.lane.b32.xlu0 %v1059, 111
    %v1075 = vpop.permute.xlu0 %1074
    %1076 = vrot.lane.b32.xlu0 %v1060, 111
    %v1077 = vpop.permute.xlu0 %1076
    %1078 = vrot.lane.b32.xlu0 %v1061, 111
    %v1079 = vpop.permute.xlu0 %1078
    %1080 = vrot.lane.b32.xlu0 %v1062, 111
    %v1081 = vpop.permute.xlu0 %1080
    %1082 = vrot.lane.b32.xlu0 %v1063, 111
    %v1083 = vpop.permute.xlu0 %1082
    %1084 = vrot.lane.b32.xlu0 %v1064, 111
    %v1085 = vpop.permute.xlu0 %1084
    %v1086 = vsel %vm359, %v1073, %v1075
    %v1087 = vsel %vm359, %v1075, %v1077
    %v1088 = vsel %vm359, %v1077, %v1079
    %v1089 = vsel %vm359, %v1079, %v1081
    %v1090 = vsel %vm359, %v1081, %v1083
    %v1091 = vsel %vm359, %v1083, %v1085
    %1098 = vst [vmem:[#allocation4 + $0x120] sm:$0xff] %v1086
    %1099 = vst [vmem:[#allocation4 + $0x128] sm:$0xff] %v1087
    %1100 = vst [vmem:[#allocation4 + $0x130] sm:$0xff] %v1088
    %1101 = vst [vmem:[#allocation4 + $0x138] sm:$0xff] %v1089
    %1102 = vst [vmem:[#allocation4 + $0x140] sm:$0xff] %v1090
    %1103 = vst [vmem:[#allocation4 + $0x148] sm:$0xff] %v1091
    %v1104 = vld [vmem:[#allocation2 + $0x8] sm:$0xff]
    %v1105 = vld [vmem:[#allocation2 + $0x10] sm:$0xff]
    %v1106 = vld [vmem:[#allocation2 + $0x18] sm:$0xff]
    %v1107 = vld [vmem:[#allocation2 + $0x20] sm:$0xff]
    %v1108 = vld [vmem:[#allocation2 + $0x28] sm:$0xff]
    %v1109 = vld [vmem:[#allocation2 + $0x30] sm:$0xff]
    %v1110 = vld [vmem:[#allocation2 + $0x38] sm:$0xff]
    %1118 = vrot.lane.b32.xlu0 %v1104, 110
    %v1119 = vpop.permute.xlu0 %1118
    %1120 = vrot.lane.b32.xlu0 %v1105, 110
    %v1121 = vpop.permute.xlu0 %1120
    %1122 = vrot.lane.b32.xlu0 %v1106, 110
    %v1123 = vpop.permute.xlu0 %1122
    %1124 = vrot.lane.b32.xlu0 %v1107, 110
    %v1125 = vpop.permute.xlu0 %1124
    %1126 = vrot.lane.b32.xlu0 %v1108, 110
    %v1127 = vpop.permute.xlu0 %1126
    %1128 = vrot.lane.b32.xlu0 %v1109, 110
    %v1129 = vpop.permute.xlu0 %1128
    %1130 = vrot.lane.b32.xlu0 %v1110, 110
    %v1131 = vpop.permute.xlu0 %1130
    %v1132 = vsel %vm406, %v1119, %v1121
    %v1133 = vsel %vm406, %v1121, %v1123
    %v1134 = vsel %vm406, %v1123, %v1125
    %v1135 = vsel %vm406, %v1125, %v1127
    %v1136 = vsel %vm406, %v1127, %v1129
    %v1137 = vsel %vm406, %v1129, %v1131
    %1144 = vst [vmem:[#allocation4 + $0x150] sm:$0xff] %v1132
    %1145 = vst [vmem:[#allocation4 + $0x158] sm:$0xff] %v1133
    %1146 = vst [vmem:[#allocation4 + $0x160] sm:$0xff] %v1134
    %1147 = vst [vmem:[#allocation4 + $0x168] sm:$0xff] %v1135
    %1148 = vst [vmem:[#allocation4 + $0x170] sm:$0xff] %v1136
    %1149 = vst [vmem:[#allocation4 + $0x178] sm:$0xff] %v1137
    %v1150 = vld [vmem:[#allocation2 + $0x8] sm:$0xff]
    %v1151 = vld [vmem:[#allocation2 + $0x10] sm:$0xff]
    %v1152 = vld [vmem:[#allocation2 + $0x18] sm:$0xff]
    %v1153 = vld [vmem:[#allocation2 + $0x20] sm:$0xff]
    %v1154 = vld [vmem:[#allocation2 + $0x28] sm:$0xff]
    %v1155 = vld [vmem:[#allocation2 + $0x30] sm:$0xff]
    %v1156 = vld [vmem:[#allocation2 + $0x38] sm:$0xff]
    %1164 = vrot.lane.b32.xlu0 %v1150, 109
    %v1165 = vpop.permute.xlu0 %1164
    %1166 = vrot.lane.b32.xlu0 %v1151, 109
    %v1167 = vpop.permute.xlu0 %1166
    %1168 = vrot.lane.b32.xlu0 %v1152, 109
    %v1169 = vpop.permute.xlu0 %1168
    %1170 = vrot.lane.b32.xlu0 %v1153, 109
    %v1171 = vpop.permute.xlu0 %1170
    %1172 = vrot.lane.b32.xlu0 %v1154, 109
    %v1173 = vpop.permute.xlu0 %1172
    %1174 = vrot.lane.b32.xlu0 %v1155, 109
    %v1175 = vpop.permute.xlu0 %1174
    %1176 = vrot.lane.b32.xlu0 %v1156, 109
    %v1177 = vpop.permute.xlu0 %1176
    %v1178 = vsel %vm453, %v1165, %v1167
    %v1179 = vsel %vm453, %v1167, %v1169
    %v1180 = vsel %vm453, %v1169, %v1171
    %v1181 = vsel %vm453, %v1171, %v1173
    %v1182 = vsel %vm453, %v1173, %v1175
    %v1183 = vsel %vm453, %v1175, %v1177
    %1190 = vst [vmem:[#allocation4 + $0x180] sm:$0xff] %v1178
    %1191 = vst [vmem:[#allocation4 + $0x188] sm:$0xff] %v1179
    %1192 = vst [vmem:[#allocation4 + $0x190] sm:$0xff] %v1180
    %1193 = vst [vmem:[#allocation4 + $0x198] sm:$0xff] %v1181
    %1194 = vst [vmem:[#allocation4 + $0x1a0] sm:$0xff] %v1182
    %1195 = vst [vmem:[#allocation4 + $0x1a8] sm:$0xff] %v1183
    %v1196 = vld [vmem:[%s4] sm:$0xff]
    %v1197 = vld [vmem:[#allocation4] sm:$0xff]
    %v1198 = vld [vmem:[#allocation4 + $0x8] sm:$0xff]
    %v1199 = vld [vmem:[#allocation4 + $0x10] sm:$0xff]
    %v1200 = vld [vmem:[#allocation4 + $0x18] sm:$0xff]
    %v1201 = vld [vmem:[#allocation4 + $0x20] sm:$0xff]
    %v1202 = vld [vmem:[#allocation4 + $0x28] sm:$0xff]
    %v1203 = vld [vmem:[#allocation4 + $0x30] sm:$0xff]
    %v1204 = vld [vmem:[#allocation4 + $0x38] sm:$0xff]
    %v1205 = vld [vmem:[#allocation4 + $0x40] sm:$0xff]
    %v1206 = vld [vmem:[#allocation4 + $0x48] sm:$0xff]
    %v1207 = vld [vmem:[#allocation4 + $0x50] sm:$0xff]
    %v1208 = vld [vmem:[#allocation4 + $0x58] sm:$0xff]
    %v1209 = vld [vmem:[#allocation4 + $0x60] sm:$0xff]
    %v1210 = vld [vmem:[#allocation4 + $0x68] sm:$0xff]
    %v1211 = vld [vmem:[#allocation4 + $0x70] sm:$0xff]
    %v1212 = vld [vmem:[#allocation4 + $0x78] sm:$0xff]
    %v1213 = vld [vmem:[#allocation4 + $0x80] sm:$0xff]
    %v1214 = vld [vmem:[#allocation4 + $0x88] sm:$0xff]
    %v1215 = vld [vmem:[#allocation4 + $0x90] sm:$0xff]
    %v1216 = vld [vmem:[#allocation4 + $0x98] sm:$0xff]
    %v1217 = vld [vmem:[#allocation4 + $0xa0] sm:$0xff]
    %v1218 = vld [vmem:[#allocation4 + $0xa8] sm:$0xff]
    %v1219 = vld [vmem:[#allocation4 + $0xb0] sm:$0xff]
    %v1220 = vld [vmem:[#allocation4 + $0xb8] sm:$0xff]
    %v1221 = vld [vmem:[#allocation4 + $0xc0] sm:$0xff]
    %v1222 = vld [vmem:[#allocation4 + $0xc8] sm:$0xff]
    %v1223 = vld [vmem:[#allocation4 + $0xd0] sm:$0xff]
    %v1224 = vld [vmem:[#allocation4 + $0xd8] sm:$0xff]
    %v1225 = vld [vmem:[#allocation4 + $0xe0] sm:$0xff]
    %v1226 = vld [vmem:[#allocation4 + $0xe8] sm:$0xff]
    %v1227 = vld [vmem:[#allocation4 + $0xf0] sm:$0xff]
    %v1228 = vld [vmem:[#allocation4 + $0xf8] sm:$0xff]
    %v1229 = vld [vmem:[#allocation4 + $0x100] sm:$0xff]
    %v1230 = vld [vmem:[#allocation4 + $0x108] sm:$0xff]
    %v1231 = vld [vmem:[#allocation4 + $0x110] sm:$0xff]
    %v1232 = vld [vmem:[#allocation4 + $0x118] sm:$0xff]
    %v1233 = vld [vmem:[#allocation4 + $0x120] sm:$0xff]
    %v1234 = vld [vmem:[#allocation4 + $0x128] sm:$0xff]
    %v1235 = vld [vmem:[#allocation4 + $0x130] sm:$0xff]
    %v1236 = vld [vmem:[#allocation4 + $0x138] sm:$0xff]
    %v1237 = vld [vmem:[#allocation4 + $0x140] sm:$0xff]
    %v1238 = vld [vmem:[#allocation4 + $0x148] sm:$0xff]
    %v1239 = vld [vmem:[#allocation4 + $0x150] sm:$0xff]
    %v1240 = vld [vmem:[#allocation4 + $0x158] sm:$0xff]
    %v1241 = vld [vmem:[#allocation4 + $0x160] sm:$0xff]
    %v1242 = vld [vmem:[#allocation4 + $0x168] sm:$0xff]
    %v1243 = vld [vmem:[#allocation4 + $0x170] sm:$0xff]
    %v1244 = vld [vmem:[#allocation4 + $0x178] sm:$0xff]
    %v1245 = vld [vmem:[#allocation4 + $0x180] sm:$0xff]
    %v1246 = vld [vmem:[#allocation4 + $0x188] sm:$0xff]
    %v1247 = vld [vmem:[#allocation4 + $0x190] sm:$0xff]
    %v1248 = vld [vmem:[#allocation4 + $0x198] sm:$0xff]
    %v1249 = vld [vmem:[#allocation4 + $0x1a0] sm:$0xff]
    %v1250 = vld [vmem:[#allocation4 + $0x1a8] sm:$0xff]
    %v1251 = vld [vmem:[%s5] sm:$0xff]
    %1253 = vset.pattern.permute.xlu0 0
    %1254 = vperm.xlu0 %1253, %v1251
    %v1255 = vpop.permute.xlu0 %1254
    %v1258 = vsel %vm533, %v1196, 0
    %1260 = vmatprep.subr.mxu0 %v1198
    %1261 = vmatpush1.msra.mxu0 %v1197
    %1262 = vmatprep.subr.mxu0 %v1204
    %1263 = vmatpush1.msra.mxu0 %v1203
    %1264 = vmatprep.subr.mxu0 %v1210
    %1265 = vmatpush1.msra.mxu0 %v1209
    %1266 = vmatprep.subr.mxu0 %v1216
    %1267 = vmatpush1.msra.mxu0 %v1215
    %1268 = vmatprep.subr.mxu0 %v1222
    %1269 = vmatpush1.msra.mxu0 %v1221
    %1270 = vmatprep.subr.mxu0 %v1228
    %1271 = vmatpush1.msra.mxu0 %v1227
    %1272 = vmatprep.subr.mxu0 %v1234
    %1273 = vmatpush1.msra.mxu0 %v1233
    %1274 = vmatprep.subr.mxu0 %v1240
    %1275 = vmatpush1.msra.mxu0 %v1239
    %1276 = vmatprep.subr.mxu0 %v1246
    %1277 = vmatpush1.msra.mxu0 %v1245
    %1278 = vmatprep.subr.mxu0 0.0
    %1279 = vmatpush1.msra.mxu0 0.0
    %1280 = vmatprep.subr.mxu0 0.0
    %1281 = vmatpush1.msra.mxu0 0.0
    %1282 = vmatprep.subr.mxu0 0.0
    %1283 = vmatpush1.msra.mxu0 0.0
    %1284 = vmatprep.subr.mxu0 0.0
    %1285 = vmatpush1.msra.mxu0 0.0
    %1286 = vmatprep.subr.mxu0 0.0
    %1287 = vmatpush1.msra.mxu0 0.0
    %1288 = vmatprep.subr.mxu0 0.0
    %1289 = vmatpush1.msra.mxu0 0.0
    %1290 = vmatprep.subr.mxu0 0.0
    %1291 = vmatpush1.msra.mxu0 0.0
    %1292 = vmatprep.subr.mxu0 0.0
    %1293 = vmatpush1.msra.mxu0 0.0
    %1294 = vmatprep.subr.mxu0 0.0
    %1295 = vmatpush1.msra.mxu0 0.0
    %1296 = vmatprep.subr.mxu0 0.0
    %1297 = vmatpush1.msra.mxu0 0.0
    %1298 = vmatprep.subr.mxu0 0.0
    %1299 = vmatpush1.msra.mxu0 0.0
    %1300 = vmatprep.subr.mxu0 0.0
    %1301 = vmatpush1.msra.mxu0 0.0
    %1302 = vmatprep.subr.mxu0 0.0
    %1303 = vmatpush1.msra.mxu0 0.0
    %1304 = vmatprep.subr.mxu0 0.0
    %1305 = vmatpush1.msra.mxu0 0.0
    %1306 = vmatprep.subr.mxu0 0.0
    %1307 = vmatpush1.msra.mxu0 0.0
    %1308 = vmatprep.subr.mxu0 0.0
    %1309 = vmatpush1.msra.mxu0 0.0
    %1310 = vmatprep.subr.mxu0 0.0
    %1311 = vmatpush1.msra.mxu0 0.0
    %1312 = vmatprep.subr.mxu0 0.0
    %1313 = vmatpush1.msra.mxu0 0.0
    %1314 = vmatprep.subr.mxu0 0.0
    %1315 = vmatpush1.msra.mxu0 0.0
    %1316 = vmatprep.subr.mxu0 0.0
    %1317 = vmatpush1.msra.mxu0 0.0
    %1318 = vmatprep.subr.mxu0 0.0
    %1319 = vmatpush1.msra.mxu0 0.0
    %1320 = vmatprep.subr.mxu0 0.0
    %1321 = vmatpush1.msra.mxu0 0.0
    %1322 = vmatprep.subr.mxu0 0.0
    %1323 = vmatpush1.msra.mxu0 0.0
    %1324 = vmatprep.mubr.f32.mxu0 0.0
    %1325 = vmatmul.mubr.f32.gmra.mrb[0].mxu0 %v1258
    %v1326 = vpop.f32.mrb[0].mxu0
    %v1327 = vadd.f32 %v1255, %v1326
    %v1328 = vpop.f32.mrb[0].mxu0
    %v1329 = vadd.f32 %v1255, %v1328
    %1330 = vdwg.mxu0
    %1331 = vmatprep.subr.mxu0 %v1200
    %1332 = vmatpush1.msra.mxu0 %v1199
    %1333 = vmatprep.subr.mxu0 %v1206
    %1334 = vmatpush1.msra.mxu0 %v1205
    %1335 = vmatprep.subr.mxu0 %v1212
    %1336 = vmatpush1.msra.mxu0 %v1211
    %1337 = vmatprep.subr.mxu0 %v1218
    %1338 = vmatpush1.msra.mxu0 %v1217
    %1339 = vmatprep.subr.mxu0 %v1224
    %1340 = vmatpush1.msra.mxu0 %v1223
    %1341 = vmatprep.subr.mxu0 %v1230
    %1342 = vmatpush1.msra.mxu0 %v1229
    %1343 = vmatprep.subr.mxu0 %v1236
    %1344 = vmatpush1.msra.mxu0 %v1235
    %1345 = vmatprep.subr.mxu0 %v1242
    %1346 = vmatpush1.msra.mxu0 %v1241
    %1347 = vmatprep.subr.mxu0 %v1248
    %1348 = vmatpush1.msra.mxu0 %v1247
    %1349 = vmatprep.subr.mxu0 0.0
    %1350 = vmatpush1.msra.mxu0 0.0
    %1351 = vmatprep.subr.mxu0 0.0
    %1352 = vmatpush1.msra.mxu0 0.0
    %1353 = vmatprep.subr.mxu0 0.0
    %1354 = vmatpush1.msra.mxu0 0.0
    %1355 = vmatprep.subr.mxu0 0.0
    %1356 = vmatpush1.msra.mxu0 0.0
    %1357 = vmatprep.subr.mxu0 0.0
    %1358 = vmatpush1.msra.mxu0 0.0
    %1359 = vmatprep.subr.mxu0 0.0
    %1360 = vmatpush1.msra.mxu0 0.0
    %1361 = vmatprep.subr.mxu0 0.0
    %1362 = vmatpush1.msra.mxu0 0.0
    %1363 = vmatprep.subr.mxu0 0.0
    %1364 = vmatpush1.msra.mxu0 0.0
    %1365 = vmatprep.subr.mxu0 0.0
    %1366 = vmatpush1.msra.mxu0 0.0
    %1367 = vmatprep.subr.mxu0 0.0
    %1368 = vmatpush1.msra.mxu0 0.0
    %1369 = vmatprep.subr.mxu0 0.0
    %1370 = vmatpush1.msra.mxu0 0.0
    %1371 = vmatprep.subr.mxu0 0.0
    %1372 = vmatpush1.msra.mxu0 0.0
    %1373 = vmatprep.subr.mxu0 0.0
    %1374 = vmatpush1.msra.mxu0 0.0
    %1375 = vmatprep.subr.mxu0 0.0
    %1376 = vmatpush1.msra.mxu0 0.0
    %1377 = vmatprep.subr.mxu0 0.0
    %1378 = vmatpush1.msra.mxu0 0.0
    %1379 = vmatprep.subr.mxu0 0.0
    %1380 = vmatpush1.msra.mxu0 0.0
    %1381 = vmatprep.subr.mxu0 0.0
    %1382 = vmatpush1.msra.mxu0 0.0
    %1383 = vmatprep.subr.mxu0 0.0
    %1384 = vmatpush1.msra.mxu0 0.0
    %1385 = vmatprep.subr.mxu0 0.0
    %1386 = vmatpush1.msra.mxu0 0.0
    %1387 = vmatprep.subr.mxu0 0.0
    %1388 = vmatpush1.msra.mxu0 0.0
    %1389 = vmatprep.subr.mxu0 0.0
    %1390 = vmatpush1.msra.mxu0 0.0
    %1391 = vmatprep.subr.mxu0 0.0
    %1392 = vmatpush1.msra.mxu0 0.0
    %1393 = vmatprep.subr.mxu0 0.0
    %1394 = vmatpush1.msra.mxu0 0.0
    %1395 = vmatprep.mubr.f32.mxu0 0.0
    %1396 = vmatmul.mubr.f32.gmra.mrb[0].mxu0 %v1258
    %v1397 = vpop.f32.mrb[0].mxu0
    %v1398 = vadd.f32 %v1255, %v1397
    %v1399 = vpop.f32.mrb[0].mxu0
    %v1400 = vadd.f32 %v1255, %v1399
    %1401 = vdwg.mxu0
    %1402 = vmatprep.subr.mxu0 %v1202
    %1403 = vmatpush1.msra.mxu0 %v1201
    %1404 = vmatprep.subr.mxu0 %v1208
    %1405 = vmatpush1.msra.mxu0 %v1207
    %1406 = vmatprep.subr.mxu0 %v1214
    %1407 = vmatpush1.msra.mxu0 %v1213
    %1408 = vmatprep.subr.mxu0 %v1220
    %1409 = vmatpush1.msra.mxu0 %v1219
    %1410 = vmatprep.subr.mxu0 %v1226
    %1411 = vmatpush1.msra.mxu0 %v1225
    %1412 = vmatprep.subr.mxu0 %v1232
    %1413 = vmatpush1.msra.mxu0 %v1231
    %1414 = vmatprep.subr.mxu0 %v1238
    %1415 = vmatpush1.msra.mxu0 %v1237
    %1416 = vmatprep.subr.mxu0 %v1244
    %1417 = vmatpush1.msra.mxu0 %v1243
    %1418 = vmatprep.subr.mxu0 %v1250
    %1419 = vmatpush1.msra.mxu0 %v1249
    %1420 = vmatprep.subr.mxu0 0.0
    %1421 = vmatpush1.msra.mxu0 0.0
    %1422 = vmatprep.subr.mxu0 0.0
    %1423 = vmatpush1.msra.mxu0 0.0
    %1424 = vmatprep.subr.mxu0 0.0
    %1425 = vmatpush1.msra.mxu0 0.0
    %1426 = vmatprep.subr.mxu0 0.0
    %1427 = vmatpush1.msra.mxu0 0.0
    %1428 = vmatprep.subr.mxu0 0.0
    %1429 = vmatpush1.msra.mxu0 0.0
    %1430 = vmatprep.subr.mxu0 0.0
    %1431 = vmatpush1.msra.mxu0 0.0
    %1432 = vmatprep.subr.mxu0 0.0
    %1433 = vmatpush1.msra.mxu0 0.0
    %1434 = vmatprep.subr.mxu0 0.0
    %1435 = vmatpush1.msra.mxu0 0.0
    %1436 = vmatprep.subr.mxu0 0.0
    %1437 = vmatpush1.msra.mxu0 0.0
    %1438 = vmatprep.subr.mxu0 0.0
    %1439 = vmatpush1.msra.mxu0 0.0
    %1440 = vmatprep.subr.mxu0 0.0
    %1441 = vmatpush1.msra.mxu0 0.0
    %1442 = vmatprep.subr.mxu0 0.0
    %1443 = vmatpush1.msra.mxu0 0.0
    %1444 = vmatprep.subr.mxu0 0.0
    %1445 = vmatpush1.msra.mxu0 0.0
    %1446 = vmatprep.subr.mxu0 0.0
    %1447 = vmatpush1.msra.mxu0 0.0
    %1448 = vmatprep.subr.mxu0 0.0
    %1449 = vmatpush1.msra.mxu0 0.0
    %1450 = vmatprep.subr.mxu0 0.0
    %1451 = vmatpush1.msra.mxu0 0.0
    %1452 = vmatprep.subr.mxu0 0.0
    %1453 = vmatpush1.msra.mxu0 0.0
    %1454 = vmatprep.subr.mxu0 0.0
    %1455 = vmatpush1.msra.mxu0 0.0
    %1456 = vmatprep.subr.mxu0 0.0
    %1457 = vmatpush1.msra.mxu0 0.0
    %1458 = vmatprep.subr.mxu0 0.0
    %1459 = vmatpush1.msra.mxu0 0.0
    %1460 = vmatprep.subr.mxu0 0.0
    %1461 = vmatpush1.msra.mxu0 0.0
    %1462 = vmatprep.subr.mxu0 0.0
    %1463 = vmatpush1.msra.mxu0 0.0
    %1464 = vmatprep.subr.mxu0 0.0
    %1465 = vmatpush1.msra.mxu0 0.0
    %1466 = vmatprep.mubr.f32.mxu0 0.0
    %1467 = vmatmul.mubr.f32.gmra.mrb[0].mxu0 %v1258
    %v1468 = vpop.f32.mrb[0].mxu0
    %v1469 = vadd.f32 %v1255, %v1468
    %v1470 = vpop.f32.mrb[0].mxu0
    %v1471 = vadd.f32 %v1255, %v1470
    %1472 = vdwg.mxu0
    %v1473 = vsel %vm74, %v1327, 0.0
    %v1474 = vsel %vm75, %v1329, 0.0
    %v1475 = vsel %vm76, %v1398, 0.0
    %v1476 = vsel %vm77, %v1400, 0.0
    %v1477 = vsel %vm78, %v1469, 0.0
    %v1478 = vsel %vm79, %v1471, 0.0
    %v1479 = vmin.f32 %v1473, 20.0
    %v1480 = vmin.f32 %v1474, 20.0
    %v1481 = vmin.f32 %v1475, 20.0
    %v1482 = vmin.f32 %v1476, 20.0
    %v1483 = vmin.f32 %v1477, 20.0
    %v1484 = vmin.f32 %v1478, 20.0
    %v1485 = vmul.f32 %v1479, 1.442695
    %v1486 = vpow.pop %v1485
    %v1487 = vmul.f32 %v1480, 1.442695
    %v1488 = vpow.pop %v1487
    %v1489 = vmul.f32 %v1481, 1.442695
    %v1490 = vpow.pop %v1489
    %v1491 = vmul.f32 %v1482, 1.442695
    %v1492 = vpow.pop %v1491
    %v1493 = vmul.f32 %v1483, 1.442695
    %v1494 = vpow.pop %v1493
    %v1495 = vmul.f32 %v1484, 1.442695
    %v1496 = vpow.pop %v1495
    %v1497 = vadd.f32 %v1486, 2.0
    %v1498 = vadd.f32 %v1488, 2.0
    %v1499 = vadd.f32 %v1490, 2.0
    %v1500 = vadd.f32 %v1492, 2.0
    %v1501 = vadd.f32 %v1494, 2.0
    %v1502 = vadd.f32 %v1496, 2.0
    %v1503 = vmul.f32 %v1486, %v1497
    %v1504 = vmul.f32 %v1488, %v1498
    %v1505 = vmul.f32 %v1490, %v1499
    %v1506 = vmul.f32 %v1492, %v1500
    %v1507 = vmul.f32 %v1494, %v1501
    %v1508 = vmul.f32 %v1496, %v1502
    %v1509 = vadd.f32 %v1503, 2.0
    %v1510 = vadd.f32 %v1504, 2.0
    %v1511 = vadd.f32 %v1505, 2.0
    %v1512 = vadd.f32 %v1506, 2.0
    %v1513 = vadd.f32 %v1507, 2.0
    %v1514 = vadd.f32 %v1508, 2.0
    %v1515 = vrcp.pop %v1509
    %v1516 = vrcp.pop %v1510
    %v1517 = vrcp.pop %v1511
    %v1518 = vrcp.pop %v1512
    %v1519 = vrcp.pop %v1513
    %v1520 = vrcp.pop %v1514
    %v1521 = vmul.f32 %v1503, %v1515
    %v1522 = vmul.f32 %v1504, %v1516
    %v1523 = vmul.f32 %v1505, %v1517
    %v1524 = vmul.f32 %v1506, %v1518
    %v1525 = vmul.f32 %v1507, %v1519
    %v1526 = vmul.f32 %v1508, %v1520
    %v1527 = vmul.f32 %v1473, %v1521
    %v1528 = vmul.f32 %v1474, %v1522
    %v1529 = vmul.f32 %v1475, %v1523
    %v1530 = vmul.f32 %v1476, %v1524
    %v1531 = vmul.f32 %v1477, %v1525
    %v1532 = vmul.f32 %v1478, %v1526
    %1533 = vst [vmem:[#allocation3 + $0x8] sm:$0xff] %v1527
    %1534 = vst [vmem:[#allocation3 + $0x10] sm:$0xff] %v1528
    %1535 = vst [vmem:[#allocation3 + $0x18] sm:$0xff] %v1529
    %1536 = vst [vmem:[#allocation3 + $0x20] sm:$0xff] %v1530
    %1537 = vst [vmem:[#allocation3 + $0x28] sm:$0xff] %v1531
    %1538 = vst [vmem:[#allocation3 + $0x30] sm:$0xff] %v1532
    %v1539 = vld [vmem:[#allocation3] sm:$0xff]
    %v1540 = vld [vmem:[#allocation3 + $0x8] sm:$0xff]
    %v1541 = vld [vmem:[#allocation3 + $0x10] sm:$0xff]
    %v1542 = vld [vmem:[#allocation3 + $0x18] sm:$0xff]
    %v1543 = vld [vmem:[#allocation3 + $0x20] sm:$0xff]
    %v1544 = vld [vmem:[#allocation3 + $0x28] sm:$0xff]
    %v1545 = vld [vmem:[#allocation3 + $0x30] sm:$0xff]
    %1553 = vrot.lane.b32.xlu0 %v1539, 19
    %v1554 = vpop.permute.xlu0 %1553
    %1555 = vrot.lane.b32.xlu0 %v1540, 19
    %v1556 = vpop.permute.xlu0 %1555
    %1557 = vrot.lane.b32.xlu0 %v1541, 19
    %v1558 = vpop.permute.xlu0 %1557
    %1559 = vrot.lane.b32.xlu0 %v1542, 19
    %v1560 = vpop.permute.xlu0 %1559
    %1561 = vrot.lane.b32.xlu0 %v1543, 19
    %v1562 = vpop.permute.xlu0 %1561
    %1563 = vrot.lane.b32.xlu0 %v1544, 19
    %v1564 = vpop.permute.xlu0 %1563
    %1565 = vrot.lane.b32.xlu0 %v1545, 19
    %v1566 = vpop.permute.xlu0 %1565
    %v1567 = vsel %vm112, %v1554, %v1556
    %v1568 = vsel %vm112, %v1556, %v1558
    %v1569 = vsel %vm112, %v1558, %v1560
    %v1570 = vsel %vm112, %v1560, %v1562
    %v1571 = vsel %vm112, %v1562, %v1564
    %v1572 = vsel %vm112, %v1564, %v1566
    %1579 = vst [vmem:[#allocation4] sm:$0xff] %v1567
    %1580 = vst [vmem:[#allocation4 + $0x8] sm:$0xff] %v1568
    %1581 = vst [vmem:[#allocation4 + $0x10] sm:$0xff] %v1569
    %1582 = vst [vmem:[#allocation4 + $0x18] sm:$0xff] %v1570
    %1583 = vst [vmem:[#allocation4 + $0x20] sm:$0xff] %v1571
    %1584 = vst [vmem:[#allocation4 + $0x28] sm:$0xff] %v1572
    %v1585 = vld [vmem:[#allocation3] sm:$0xff]
    %v1586 = vld [vmem:[#allocation3 + $0x8] sm:$0xff]
    %v1587 = vld [vmem:[#allocation3 + $0x10] sm:$0xff]
    %v1588 = vld [vmem:[#allocation3 + $0x18] sm:$0xff]
    %v1589 = vld [vmem:[#allocation3 + $0x20] sm:$0xff]
    %v1590 = vld [vmem:[#allocation3 + $0x28] sm:$0xff]
    %v1591 = vld [vmem:[#allocation3 + $0x30] sm:$0xff]
    %1599 = vrot.lane.b32.xlu0 %v1585, 18
    %v1600 = vpop.permute.xlu0 %1599
    %1601 = vrot.lane.b32.xlu0 %v1586, 18
    %v1602 = vpop.permute.xlu0 %1601
    %1603 = vrot.lane.b32.xlu0 %v1587, 18
    %v1604 = vpop.permute.xlu0 %1603
    %1605 = vrot.lane.b32.xlu0 %v1588, 18
    %v1606 = vpop.permute.xlu0 %1605
    %1607 = vrot.lane.b32.xlu0 %v1589, 18
    %v1608 = vpop.permute.xlu0 %1607
    %1609 = vrot.lane.b32.xlu0 %v1590, 18
    %v1610 = vpop.permute.xlu0 %1609
    %1611 = vrot.lane.b32.xlu0 %v1591, 18
    %v1612 = vpop.permute.xlu0 %1611
    %v1613 = vsel %vm159, %v1600, %v1602
    %v1614 = vsel %vm159, %v1602, %v1604
    %v1615 = vsel %vm159, %v1604, %v1606
    %v1616 = vsel %vm159, %v1606, %v1608
    %v1617 = vsel %vm159, %v1608, %v1610
    %v1618 = vsel %vm159, %v1610, %v1612
    %1625 = vst [vmem:[#allocation4 + $0x30] sm:$0xff] %v1613
    %1626 = vst [vmem:[#allocation4 + $0x38] sm:$0xff] %v1614
    %1627 = vst [vmem:[#allocation4 + $0x40] sm:$0xff] %v1615
    %1628 = vst [vmem:[#allocation4 + $0x48] sm:$0xff] %v1616
    %1629 = vst [vmem:[#allocation4 + $0x50] sm:$0xff] %v1617
    %1630 = vst [vmem:[#allocation4 + $0x58] sm:$0xff] %v1618
    %v1631 = vld [vmem:[#allocation3] sm:$0xff]
    %v1632 = vld [vmem:[#allocation3 + $0x8] sm:$0xff]
    %v1633 = vld [vmem:[#allocation3 + $0x10] sm:$0xff]
    %v1634 = vld [vmem:[#allocation3 + $0x18] sm:$0xff]
    %v1635 = vld [vmem:[#allocation3 + $0x20] sm:$0xff]
    %v1636 = vld [vmem:[#allocation3 + $0x28] sm:$0xff]
    %v1637 = vld [vmem:[#allocation3 + $0x30] sm:$0xff]
    %1645 = vrot.lane.b32.xlu0 %v1631, 17
    %v1646 = vpop.permute.xlu0 %1645
    %1647 = vrot.lane.b32.xlu0 %v1632, 17
    %v1648 = vpop.permute.xlu0 %1647
    %1649 = vrot.lane.b32.xlu0 %v1633, 17
    %v1650 = vpop.permute.xlu0 %1649
    %1651 = vrot.lane.b32.xlu0 %v1634, 17
    %v1652 = vpop.permute.xlu0 %1651
    %1653 = vrot.lane.b32.xlu0 %v1635, 17
    %v1654 = vpop.permute.xlu0 %1653
    %1655 = vrot.lane.b32.xlu0 %v1636, 17
    %v1656 = vpop.permute.xlu0 %1655
    %1657 = vrot.lane.b32.xlu0 %v1637, 17
    %v1658 = vpop.permute.xlu0 %1657
    %v1659 = vsel %vm206, %v1646, %v1648
    %v1660 = vsel %vm206, %v1648, %v1650
    %v1661 = vsel %vm206, %v1650, %v1652
    %v1662 = vsel %vm206, %v1652, %v1654
    %v1663 = vsel %vm206, %v1654, %v1656
    %v1664 = vsel %vm206, %v1656, %v1658
    %1671 = vst [vmem:[#allocation4 + $0x60] sm:$0xff] %v1659
    %1672 = vst [vmem:[#allocation4 + $0x68] sm:$0xff] %v1660
    %1673 = vst [vmem:[#allocation4 + $0x70] sm:$0xff] %v1661
    %1674 = vst [vmem:[#allocation4 + $0x78] sm:$0xff] %v1662
    %1675 = vst [vmem:[#allocation4 + $0x80] sm:$0xff] %v1663
    %1676 = vst [vmem:[#allocation4 + $0x88] sm:$0xff] %v1664
    %v1677 = vld [vmem:[#allocation3] sm:$0xff]
    %v1678 = vld [vmem:[#allocation3 + $0x8] sm:$0xff]
    %v1679 = vld [vmem:[#allocation3 + $0x10] sm:$0xff]
    %v1680 = vld [vmem:[#allocation3 + $0x18] sm:$0xff]
    %v1681 = vld [vmem:[#allocation3 + $0x20] sm:$0xff]
    %v1682 = vld [vmem:[#allocation3 + $0x28] sm:$0xff]
    %v1683 = vld [vmem:[#allocation3 + $0x30] sm:$0xff]
    %1691 = vrot.lane.b32.xlu0 %v1677, 1
    %v1692 = vpop.permute.xlu0 %1691
    %1693 = vrot.lane.b32.xlu0 %v1678, 1
    %v1694 = vpop.permute.xlu0 %1693
    %1695 = vrot.lane.b32.xlu0 %v1679, 1
    %v1696 = vpop.permute.xlu0 %1695
    %1697 = vrot.lane.b32.xlu0 %v1680, 1
    %v1698 = vpop.permute.xlu0 %1697
    %1699 = vrot.lane.b32.xlu0 %v1681, 1
    %v1700 = vpop.permute.xlu0 %1699
    %1701 = vrot.lane.b32.xlu0 %v1682, 1
    %v1702 = vpop.permute.xlu0 %1701
    %1703 = vrot.lane.b32.xlu0 %v1683, 1
    %v1704 = vpop.permute.xlu0 %1703
    %v1705 = vsel %vm253, %v1692, %v1694
    %v1706 = vsel %vm253, %v1694, %v1696
    %v1707 = vsel %vm253, %v1696, %v1698
    %v1708 = vsel %vm253, %v1698, %v1700
    %v1709 = vsel %vm253, %v1700, %v1702
    %v1710 = vsel %vm253, %v1702, %v1704
    %1717 = vst [vmem:[#allocation4 + $0x90] sm:$0xff] %v1705
    %1718 = vst [vmem:[#allocation4 + $0x98] sm:$0xff] %v1706
    %1719 = vst [vmem:[#allocation4 + $0xa0] sm:$0xff] %v1707
    %1720 = vst [vmem:[#allocation4 + $0xa8] sm:$0xff] %v1708
    %1721 = vst [vmem:[#allocation4 + $0xb0] sm:$0xff] %v1709
    %1722 = vst [vmem:[#allocation4 + $0xb8] sm:$0xff] %v1710
    %v1723 = vld [vmem:[#allocation3 + $0x8] sm:$0xff]
    %v1724 = vld [vmem:[#allocation3 + $0x10] sm:$0xff]
    %v1725 = vld [vmem:[#allocation3 + $0x18] sm:$0xff]
    %v1726 = vld [vmem:[#allocation3 + $0x20] sm:$0xff]
    %v1727 = vld [vmem:[#allocation3 + $0x28] sm:$0xff]
    %v1728 = vld [vmem:[#allocation3 + $0x30] sm:$0xff]
    %1729 = vst [vmem:[#allocation4 + $0xc0] sm:$0xff] %v1723
    %1730 = vst [vmem:[#allocation4 + $0xc8] sm:$0xff] %v1724
    %1731 = vst [vmem:[#allocation4 + $0xd0] sm:$0xff] %v1725
    %1732 = vst [vmem:[#allocation4 + $0xd8] sm:$0xff] %v1726
    %1733 = vst [vmem:[#allocation4 + $0xe0] sm:$0xff] %v1727
    %1734 = vst [vmem:[#allocation4 + $0xe8] sm:$0xff] %v1728
    %v1735 = vld [vmem:[#allocation3 + $0x8] sm:$0xff]
    %v1736 = vld [vmem:[#allocation3 + $0x10] sm:$0xff]
    %v1737 = vld [vmem:[#allocation3 + $0x18] sm:$0xff]
    %v1738 = vld [vmem:[#allocation3 + $0x20] sm:$0xff]
    %v1739 = vld [vmem:[#allocation3 + $0x28] sm:$0xff]
    %v1740 = vld [vmem:[#allocation3 + $0x30] sm:$0xff]
    %v1741 = vld [vmem:[#allocation3 + $0x38] sm:$0xff]
    %1749 = vrot.lane.b32.xlu0 %v1735, 127
    %v1750 = vpop.permute.xlu0 %1749
    %1751 = vrot.lane.b32.xlu0 %v1736, 127
    %v1752 = vpop.permute.xlu0 %1751
    %1753 = vrot.lane.b32.xlu0 %v1737, 127
    %v1754 = vpop.permute.xlu0 %1753
    %1755 = vrot.lane.b32.xlu0 %v1738, 127
    %v1756 = vpop.permute.xlu0 %1755
    %1757 = vrot.lane.b32.xlu0 %v1739, 127
    %v1758 = vpop.permute.xlu0 %1757
    %1759 = vrot.lane.b32.xlu0 %v1740, 127
    %v1760 = vpop.permute.xlu0 %1759
    %1761 = vrot.lane.b32.xlu0 %v1741, 127
    %v1762 = vpop.permute.xlu0 %1761
    %v1763 = vsel %vm312, %v1750, %v1752
    %v1764 = vsel %vm312, %v1752, %v1754
    %v1765 = vsel %vm312, %v1754, %v1756
    %v1766 = vsel %vm312, %v1756, %v1758
    %v1767 = vsel %vm312, %v1758, %v1760
    %v1768 = vsel %vm312, %v1760, %v1762
    %1775 = vst [vmem:[#allocation4 + $0xf0] sm:$0xff] %v1763
    %1776 = vst [vmem:[#allocation4 + $0xf8] sm:$0xff] %v1764
    %1777 = vst [vmem:[#allocation4 + $0x100] sm:$0xff] %v1765
    %1778 = vst [vmem:[#allocation4 + $0x108] sm:$0xff] %v1766
    %1779 = vst [vmem:[#allocation4 + $0x110] sm:$0xff] %v1767
    %1780 = vst [vmem:[#allocation4 + $0x118] sm:$0xff] %v1768
    %v1781 = vld [vmem:[#allocation3 + $0x8] sm:$0xff]
    %v1782 = vld [vmem:[#allocation3 + $0x10] sm:$0xff]
    %v1783 = vld [vmem:[#allocation3 + $0x18] sm:$0xff]
    %v1784 = vld [vmem:[#allocation3 + $0x20] sm:$0xff]
    %v1785 = vld [vmem:[#allocation3 + $0x28] sm:$0xff]
    %v1786 = vld [vmem:[#allocation3 + $0x30] sm:$0xff]
    %v1787 = vld [vmem:[#allocation3 + $0x38] sm:$0xff]
    %1795 = vrot.lane.b32.xlu0 %v1781, 111
    %v1796 = vpop.permute.xlu0 %1795
    %1797 = vrot.lane.b32.xlu0 %v1782, 111
    %v1798 = vpop.permute.xlu0 %1797
    %1799 = vrot.lane.b32.xlu0 %v1783, 111
    %v1800 = vpop.permute.xlu0 %1799
    %1801 = vrot.lane.b32.xlu0 %v1784, 111
    %v1802 = vpop.permute.xlu0 %1801
    %1803 = vrot.lane.b32.xlu0 %v1785, 111
    %v1804 = vpop.permute.xlu0 %1803
    %1805 = vrot.lane.b32.xlu0 %v1786, 111
    %v1806 = vpop.permute.xlu0 %1805
    %1807 = vrot.lane.b32.xlu0 %v1787, 111
    %v1808 = vpop.permute.xlu0 %1807
    %v1809 = vsel %vm359, %v1796, %v1798
    %v1810 = vsel %vm359, %v1798, %v1800
    %v1811 = vsel %vm359, %v1800, %v1802
    %v1812 = vsel %vm359, %v1802, %v1804
    %v1813 = vsel %vm359, %v1804, %v1806
    %v1814 = vsel %vm359, %v1806, %v1808
    %1821 = vst [vmem:[#allocation4 + $0x120] sm:$0xff] %v1809
    %1822 = vst [vmem:[#allocation4 + $0x128] sm:$0xff] %v1810
    %1823 = vst [vmem:[#allocation4 + $0x130] sm:$0xff] %v1811
    %1824 = vst [vmem:[#allocation4 + $0x138] sm:$0xff] %v1812
    %1825 = vst [vmem:[#allocation4 + $0x140] sm:$0xff] %v1813
    %1826 = vst [vmem:[#allocation4 + $0x148] sm:$0xff] %v1814
    %v1827 = vld [vmem:[#allocation3 + $0x8] sm:$0xff]
    %v1828 = vld [vmem:[#allocation3 + $0x10] sm:$0xff]
    %v1829 = vld [vmem:[#allocation3 + $0x18] sm:$0xff]
    %v1830 = vld [vmem:[#allocation3 + $0x20] sm:$0xff]
    %v1831 = vld [vmem:[#allocation3 + $0x28] sm:$0xff]
    %v1832 = vld [vmem:[#allocation3 + $0x30] sm:$0xff]
    %v1833 = vld [vmem:[#allocation3 + $0x38] sm:$0xff]
    %1841 = vrot.lane.b32.xlu0 %v1827, 110
    %v1842 = vpop.permute.xlu0 %1841
    %1843 = vrot.lane.b32.xlu0 %v1828, 110
    %v1844 = vpop.permute.xlu0 %1843
    %1845 = vrot.lane.b32.xlu0 %v1829, 110
    %v1846 = vpop.permute.xlu0 %1845
    %1847 = vrot.lane.b32.xlu0 %v1830, 110
    %v1848 = vpop.permute.xlu0 %1847
    %1849 = vrot.lane.b32.xlu0 %v1831, 110
    %v1850 = vpop.permute.xlu0 %1849
    %1851 = vrot.lane.b32.xlu0 %v1832, 110
    %v1852 = vpop.permute.xlu0 %1851
    %1853 = vrot.lane.b32.xlu0 %v1833, 110
    %v1854 = vpop.permute.xlu0 %1853
    %v1855 = vsel %vm406, %v1842, %v1844
    %v1856 = vsel %vm406, %v1844, %v1846
    %v1857 = vsel %vm406, %v1846, %v1848
    %v1858 = vsel %vm406, %v1848, %v1850
    %v1859 = vsel %vm406, %v1850, %v1852
    %v1860 = vsel %vm406, %v1852, %v1854
    %1867 = vst [vmem:[#allocation4 + $0x150] sm:$0xff] %v1855
    %1868 = vst [vmem:[#allocation4 + $0x158] sm:$0xff] %v1856
    %1869 = vst [vmem:[#allocation4 + $0x160] sm:$0xff] %v1857
    %1870 = vst [vmem:[#allocation4 + $0x168] sm:$0xff] %v1858
    %1871 = vst [vmem:[#allocation4 + $0x170] sm:$0xff] %v1859
    %1872 = vst [vmem:[#allocation4 + $0x178] sm:$0xff] %v1860
    %v1873 = vld [vmem:[#allocation3 + $0x8] sm:$0xff]
    %v1874 = vld [vmem:[#allocation3 + $0x10] sm:$0xff]
    %v1875 = vld [vmem:[#allocation3 + $0x18] sm:$0xff]
    %v1876 = vld [vmem:[#allocation3 + $0x20] sm:$0xff]
    %v1877 = vld [vmem:[#allocation3 + $0x28] sm:$0xff]
    %v1878 = vld [vmem:[#allocation3 + $0x30] sm:$0xff]
    %v1879 = vld [vmem:[#allocation3 + $0x38] sm:$0xff]
    %1887 = vrot.lane.b32.xlu0 %v1873, 109
    %v1888 = vpop.permute.xlu0 %1887
    %1889 = vrot.lane.b32.xlu0 %v1874, 109
    %v1890 = vpop.permute.xlu0 %1889
    %1891 = vrot.lane.b32.xlu0 %v1875, 109
    %v1892 = vpop.permute.xlu0 %1891
    %1893 = vrot.lane.b32.xlu0 %v1876, 109
    %v1894 = vpop.permute.xlu0 %1893
    %1895 = vrot.lane.b32.xlu0 %v1877, 109
    %v1896 = vpop.permute.xlu0 %1895
    %1897 = vrot.lane.b32.xlu0 %v1878, 109
    %v1898 = vpop.permute.xlu0 %1897
    %1899 = vrot.lane.b32.xlu0 %v1879, 109
    %v1900 = vpop.permute.xlu0 %1899
    %v1901 = vsel %vm453, %v1888, %v1890
    %v1902 = vsel %vm453, %v1890, %v1892
    %v1903 = vsel %vm453, %v1892, %v1894
    %v1904 = vsel %vm453, %v1894, %v1896
    %v1905 = vsel %vm453, %v1896, %v1898
    %v1906 = vsel %vm453, %v1898, %v1900
    %1913 = vst [vmem:[#allocation4 + $0x180] sm:$0xff] %v1901
    %1914 = vst [vmem:[#allocation4 + $0x188] sm:$0xff] %v1902
    %1915 = vst [vmem:[#allocation4 + $0x190] sm:$0xff] %v1903
    %1916 = vst [vmem:[#allocation4 + $0x198] sm:$0xff] %v1904
    %1917 = vst [vmem:[#allocation4 + $0x1a0] sm:$0xff] %v1905
    %1918 = vst [vmem:[#allocation4 + $0x1a8] sm:$0xff] %v1906
    %v1919 = vld [vmem:[%s6] sm:$0xff]
    %v1920 = vld [vmem:[#allocation4] sm:$0xff]
    %v1921 = vld [vmem:[#allocation4 + $0x8] sm:$0xff]
    %v1922 = vld [vmem:[#allocation4 + $0x10] sm:$0xff]
    %v1923 = vld [vmem:[#allocation4 + $0x18] sm:$0xff]
    %v1924 = vld [vmem:[#allocation4 + $0x20] sm:$0xff]
    %v1925 = vld [vmem:[#allocation4 + $0x28] sm:$0xff]
    %v1926 = vld [vmem:[#allocation4 + $0x30] sm:$0xff]
    %v1927 = vld [vmem:[#allocation4 + $0x38] sm:$0xff]
    %v1928 = vld [vmem:[#allocation4 + $0x40] sm:$0xff]
    %v1929 = vld [vmem:[#allocation4 + $0x48] sm:$0xff]
    %v1930 = vld [vmem:[#allocation4 + $0x50] sm:$0xff]
    %v1931 = vld [vmem:[#allocation4 + $0x58] sm:$0xff]
    %v1932 = vld [vmem:[#allocation4 + $0x60] sm:$0xff]
    %v1933 = vld [vmem:[#allocation4 + $0x68] sm:$0xff]
    %v1934 = vld [vmem:[#allocation4 + $0x70] sm:$0xff]
    %v1935 = vld [vmem:[#allocation4 + $0x78] sm:$0xff]
    %v1936 = vld [vmem:[#allocation4 + $0x80] sm:$0xff]
    %v1937 = vld [vmem:[#allocation4 + $0x88] sm:$0xff]
    %v1938 = vld [vmem:[#allocation4 + $0x90] sm:$0xff]
    %v1939 = vld [vmem:[#allocation4 + $0x98] sm:$0xff]
    %v1940 = vld [vmem:[#allocation4 + $0xa0] sm:$0xff]
    %v1941 = vld [vmem:[#allocation4 + $0xa8] sm:$0xff]
    %v1942 = vld [vmem:[#allocation4 + $0xb0] sm:$0xff]
    %v1943 = vld [vmem:[#allocation4 + $0xb8] sm:$0xff]
    %v1944 = vld [vmem:[#allocation4 + $0xc0] sm:$0xff]
    %v1945 = vld [vmem:[#allocation4 + $0xc8] sm:$0xff]
    %v1946 = vld [vmem:[#allocation4 + $0xd0] sm:$0xff]
    %v1947 = vld [vmem:[#allocation4 + $0xd8] sm:$0xff]
    %v1948 = vld [vmem:[#allocation4 + $0xe0] sm:$0xff]
    %v1949 = vld [vmem:[#allocation4 + $0xe8] sm:$0xff]
    %v1950 = vld [vmem:[#allocation4 + $0xf0] sm:$0xff]
    %v1951 = vld [vmem:[#allocation4 + $0xf8] sm:$0xff]
    %v1952 = vld [vmem:[#allocation4 + $0x100] sm:$0xff]
    %v1953 = vld [vmem:[#allocation4 + $0x108] sm:$0xff]
    %v1954 = vld [vmem:[#allocation4 + $0x110] sm:$0xff]
    %v1955 = vld [vmem:[#allocation4 + $0x118] sm:$0xff]
    %v1956 = vld [vmem:[#allocation4 + $0x120] sm:$0xff]
    %v1957 = vld [vmem:[#allocation4 + $0x128] sm:$0xff]
    %v1958 = vld [vmem:[#allocation4 + $0x130] sm:$0xff]
    %v1959 = vld [vmem:[#allocation4 + $0x138] sm:$0xff]
    %v1960 = vld [vmem:[#allocation4 + $0x140] sm:$0xff]
    %v1961 = vld [vmem:[#allocation4 + $0x148] sm:$0xff]
    %v1962 = vld [vmem:[#allocation4 + $0x150] sm:$0xff]
    %v1963 = vld [vmem:[#allocation4 + $0x158] sm:$0xff]
    %v1964 = vld [vmem:[#allocation4 + $0x160] sm:$0xff]
    %v1965 = vld [vmem:[#allocation4 + $0x168] sm:$0xff]
    %v1966 = vld [vmem:[#allocation4 + $0x170] sm:$0xff]
    %v1967 = vld [vmem:[#allocation4 + $0x178] sm:$0xff]
    %v1968 = vld [vmem:[#allocation4 + $0x180] sm:$0xff]
    %v1969 = vld [vmem:[#allocation4 + $0x188] sm:$0xff]
    %v1970 = vld [vmem:[#allocation4 + $0x190] sm:$0xff]
    %v1971 = vld [vmem:[#allocation4 + $0x198] sm:$0xff]
    %v1972 = vld [vmem:[#allocation4 + $0x1a0] sm:$0xff]
    %v1973 = vld [vmem:[#allocation4 + $0x1a8] sm:$0xff]
    %v1974 = vld [vmem:[%s7] sm:$0xff]
    %1976 = vset.pattern.permute.xlu0 0
    %1977 = vperm.xlu0 %1976, %v1974
    %v1978 = vpop.permute.xlu0 %1977
    %v1981 = vsel %vm533, %v1919, 0
    %1983 = vmatprep.subr.mxu0 %v1921
    %1984 = vmatpush1.msra.mxu0 %v1920
    %1985 = vmatprep.subr.mxu0 %v1927
    %1986 = vmatpush1.msra.mxu0 %v1926
    %1987 = vmatprep.subr.mxu0 %v1933
    %1988 = vmatpush1.msra.mxu0 %v1932
    %1989 = vmatprep.subr.mxu0 %v1939
    %1990 = vmatpush1.msra.mxu0 %v1938
    %1991 = vmatprep.subr.mxu0 %v1945
    %1992 = vmatpush1.msra.mxu0 %v1944
    %1993 = vmatprep.subr.mxu0 %v1951
    %1994 = vmatpush1.msra.mxu0 %v1950
    %1995 = vmatprep.subr.mxu0 %v1957
    %1996 = vmatpush1.msra.mxu0 %v1956
    %1997 = vmatprep.subr.mxu0 %v1963
    %1998 = vmatpush1.msra.mxu0 %v1962
    %1999 = vmatprep.subr.mxu0 %v1969
    %2000 = vmatpush1.msra.mxu0 %v1968
    %2001 = vmatprep.subr.mxu0 0.0
    %2002 = vmatpush1.msra.mxu0 0.0
    %2003 = vmatprep.subr.mxu0 0.0
    %2004 = vmatpush1.msra.mxu0 0.0
    %2005 = vmatprep.subr.mxu0 0.0
    %2006 = vmatpush1.msra.mxu0 0.0
    %2007 = vmatprep.subr.mxu0 0.0
    %2008 = vmatpush1.msra.mxu0 0.0
    %2009 = vmatprep.subr.mxu0 0.0
    %2010 = vmatpush1.msra.mxu0 0.0
    %2011 = vmatprep.subr.mxu0 0.0
    %2012 = vmatpush1.msra.mxu0 0.0
    %2013 = vmatprep.subr.mxu0 0.0
    %2014 = vmatpush1.msra.mxu0 0.0
    %2015 = vmatprep.subr.mxu0 0.0
    %2016 = vmatpush1.msra.mxu0 0.0
    %2017 = vmatprep.subr.mxu0 0.0
    %2018 = vmatpush1.msra.mxu0 0.0
    %2019 = vmatprep.subr.mxu0 0.0
    %2020 = vmatpush1.msra.mxu0 0.0
    %2021 = vmatprep.subr.mxu0 0.0
    %2022 = vmatpush1.msra.mxu0 0.0
    %2023 = vmatprep.subr.mxu0 0.0
    %2024 = vmatpush1.msra.mxu0 0.0
    %2025 = vmatprep.subr.mxu0 0.0
    %2026 = vmatpush1.msra.mxu0 0.0
    %2027 = vmatprep.subr.mxu0 0.0
    %2028 = vmatpush1.msra.mxu0 0.0
    %2029 = vmatprep.subr.mxu0 0.0
    %2030 = vmatpush1.msra.mxu0 0.0
    %2031 = vmatprep.subr.mxu0 0.0
    %2032 = vmatpush1.msra.mxu0 0.0
    %2033 = vmatprep.subr.mxu0 0.0
    %2034 = vmatpush1.msra.mxu0 0.0
    %2035 = vmatprep.subr.mxu0 0.0
    %2036 = vmatpush1.msra.mxu0 0.0
    %2037 = vmatprep.subr.mxu0 0.0
    %2038 = vmatpush1.msra.mxu0 0.0
    %2039 = vmatprep.subr.mxu0 0.0
    %2040 = vmatpush1.msra.mxu0 0.0
    %2041 = vmatprep.subr.mxu0 0.0
    %2042 = vmatpush1.msra.mxu0 0.0
    %2043 = vmatprep.subr.mxu0 0.0
    %2044 = vmatpush1.msra.mxu0 0.0
    %2045 = vmatprep.subr.mxu0 0.0
    %2046 = vmatpush1.msra.mxu0 0.0
    %2047 = vmatprep.mubr.f32.mxu0 0.0
    %2048 = vmatmul.mubr.f32.gmra.mrb[0].mxu0 %v1981
    %v2049 = vpop.f32.mrb[0].mxu0
    %v2050 = vadd.f32 %v1978, %v2049
    %v2051 = vpop.f32.mrb[0].mxu0
    %v2052 = vadd.f32 %v1978, %v2051
    %2053 = vdwg.mxu0
    %2054 = vmatprep.subr.mxu0 %v1923
    %2055 = vmatpush1.msra.mxu0 %v1922
    %2056 = vmatprep.subr.mxu0 %v1929
    %2057 = vmatpush1.msra.mxu0 %v1928
    %2058 = vmatprep.subr.mxu0 %v1935
    %2059 = vmatpush1.msra.mxu0 %v1934
    %2060 = vmatprep.subr.mxu0 %v1941
    %2061 = vmatpush1.msra.mxu0 %v1940
    %2062 = vmatprep.subr.mxu0 %v1947
    %2063 = vmatpush1.msra.mxu0 %v1946
    %2064 = vmatprep.subr.mxu0 %v1953
    %2065 = vmatpush1.msra.mxu0 %v1952
    %2066 = vmatprep.subr.mxu0 %v1959
    %2067 = vmatpush1.msra.mxu0 %v1958
    %2068 = vmatprep.subr.mxu0 %v1965
    %2069 = vmatpush1.msra.mxu0 %v1964
    %2070 = vmatprep.subr.mxu0 %v1971
    %2071 = vmatpush1.msra.mxu0 %v1970
    %2072 = vmatprep.subr.mxu0 0.0
    %2073 = vmatpush1.msra.mxu0 0.0
    %2074 = vmatprep.subr.mxu0 0.0
    %2075 = vmatpush1.msra.mxu0 0.0
    %2076 = vmatprep.subr.mxu0 0.0
    %2077 = vmatpush1.msra.mxu0 0.0
    %2078 = vmatprep.subr.mxu0 0.0
    %2079 = vmatpush1.msra.mxu0 0.0
    %2080 = vmatprep.subr.mxu0 0.0
    %2081 = vmatpush1.msra.mxu0 0.0
    %2082 = vmatprep.subr.mxu0 0.0
    %2083 = vmatpush1.msra.mxu0 0.0
    %2084 = vmatprep.subr.mxu0 0.0
    %2085 = vmatpush1.msra.mxu0 0.0
    %2086 = vmatprep.subr.mxu0 0.0
    %2087 = vmatpush1.msra.mxu0 0.0
    %2088 = vmatprep.subr.mxu0 0.0
    %2089 = vmatpush1.msra.mxu0 0.0
    %2090 = vmatprep.subr.mxu0 0.0
    %2091 = vmatpush1.msra.mxu0 0.0
    %2092 = vmatprep.subr.mxu0 0.0
    %2093 = vmatpush1.msra.mxu0 0.0
    %2094 = vmatprep.subr.mxu0 0.0
    %2095 = vmatpush1.msra.mxu0 0.0
    %2096 = vmatprep.subr.mxu0 0.0
    %2097 = vmatpush1.msra.mxu0 0.0
    %2098 = vmatprep.subr.mxu0 0.0
    %2099 = vmatpush1.msra.mxu0 0.0
    %2100 = vmatprep.subr.mxu0 0.0
    %2101 = vmatpush1.msra.mxu0 0.0
    %2102 = vmatprep.subr.mxu0 0.0
    %2103 = vmatpush1.msra.mxu0 0.0
    %2104 = vmatprep.subr.mxu0 0.0
    %2105 = vmatpush1.msra.mxu0 0.0
    %2106 = vmatprep.subr.mxu0 0.0
    %2107 = vmatpush1.msra.mxu0 0.0
    %2108 = vmatprep.subr.mxu0 0.0
    %2109 = vmatpush1.msra.mxu0 0.0
    %2110 = vmatprep.subr.mxu0 0.0
    %2111 = vmatpush1.msra.mxu0 0.0
    %2112 = vmatprep.subr.mxu0 0.0
    %2113 = vmatpush1.msra.mxu0 0.0
    %2114 = vmatprep.subr.mxu0 0.0
    %2115 = vmatpush1.msra.mxu0 0.0
    %2116 = vmatprep.subr.mxu0 0.0
    %2117 = vmatpush1.msra.mxu0 0.0
    %2118 = vmatprep.mubr.f32.mxu0 0.0
    %2119 = vmatmul.mubr.f32.gmra.mrb[0].mxu0 %v1981
    %v2120 = vpop.f32.mrb[0].mxu0
    %v2121 = vadd.f32 %v1978, %v2120
    %v2122 = vpop.f32.mrb[0].mxu0
    %v2123 = vadd.f32 %v1978, %v2122
    %2124 = vdwg.mxu0
    %2125 = vmatprep.subr.mxu0 %v1925
    %2126 = vmatpush1.msra.mxu0 %v1924
    %2127 = vmatprep.subr.mxu0 %v1931
    %2128 = vmatpush1.msra.mxu0 %v1930
    %2129 = vmatprep.subr.mxu0 %v1937
    %2130 = vmatpush1.msra.mxu0 %v1936
    %2131 = vmatprep.subr.mxu0 %v1943
    %2132 = vmatpush1.msra.mxu0 %v1942
    %2133 = vmatprep.subr.mxu0 %v1949
    %2134 = vmatpush1.msra.mxu0 %v1948
    %2135 = vmatprep.subr.mxu0 %v1955
    %2136 = vmatpush1.msra.mxu0 %v1954
    %2137 = vmatprep.subr.mxu0 %v1961
    %2138 = vmatpush1.msra.mxu0 %v1960
    %2139 = vmatprep.subr.mxu0 %v1967
    %2140 = vmatpush1.msra.mxu0 %v1966
    %2141 = vmatprep.subr.mxu0 %v1973
    %2142 = vmatpush1.msra.mxu0 %v1972
    %2143 = vmatprep.subr.mxu0 0.0
    %2144 = vmatpush1.msra.mxu0 0.0
    %2145 = vmatprep.subr.mxu0 0.0
    %2146 = vmatpush1.msra.mxu0 0.0
    %2147 = vmatprep.subr.mxu0 0.0
    %2148 = vmatpush1.msra.mxu0 0.0
    %2149 = vmatprep.subr.mxu0 0.0
    %2150 = vmatpush1.msra.mxu0 0.0
    %2151 = vmatprep.subr.mxu0 0.0
    %2152 = vmatpush1.msra.mxu0 0.0
    %2153 = vmatprep.subr.mxu0 0.0
    %2154 = vmatpush1.msra.mxu0 0.0
    %2155 = vmatprep.subr.mxu0 0.0
    %2156 = vmatpush1.msra.mxu0 0.0
    %2157 = vmatprep.subr.mxu0 0.0
    %2158 = vmatpush1.msra.mxu0 0.0
    %2159 = vmatprep.subr.mxu0 0.0
    %2160 = vmatpush1.msra.mxu0 0.0
    %2161 = vmatprep.subr.mxu0 0.0
    %2162 = vmatpush1.msra.mxu0 0.0
    %2163 = vmatprep.subr.mxu0 0.0
    %2164 = vmatpush1.msra.mxu0 0.0
    %2165 = vmatprep.subr.mxu0 0.0
    %2166 = vmatpush1.msra.mxu0 0.0
    %2167 = vmatprep.subr.mxu0 0.0
    %2168 = vmatpush1.msra.mxu0 0.0
    %2169 = vmatprep.subr.mxu0 0.0
    %2170 = vmatpush1.msra.mxu0 0.0
    %2171 = vmatprep.subr.mxu0 0.0
    %2172 = vmatpush1.msra.mxu0 0.0
    %2173 = vmatprep.subr.mxu0 0.0
    %2174 = vmatpush1.msra.mxu0 0.0
    %2175 = vmatprep.subr.mxu0 0.0
    %2176 = vmatpush1.msra.mxu0 0.0
    %2177 = vmatprep.subr.mxu0 0.0
    %2178 = vmatpush1.msra.mxu0 0.0
    %2179 = vmatprep.subr.mxu0 0.0
    %2180 = vmatpush1.msra.mxu0 0.0
    %2181 = vmatprep.subr.mxu0 0.0
    %2182 = vmatpush1.msra.mxu0 0.0
    %2183 = vmatprep.subr.mxu0 0.0
    %2184 = vmatpush1.msra.mxu0 0.0
    %2185 = vmatprep.subr.mxu0 0.0
    %2186 = vmatpush1.msra.mxu0 0.0
    %2187 = vmatprep.subr.mxu0 0.0
    %2188 = vmatpush1.msra.mxu0 0.0
    %2189 = vmatprep.mubr.f32.mxu0 0.0
    %2190 = vmatmul.mubr.f32.gmra.mrb[0].mxu0 %v1981
    %v2191 = vpop.f32.mrb[0].mxu0
    %v2192 = vadd.f32 %v1978, %v2191
    %v2193 = vpop.f32.mrb[0].mxu0
    %v2194 = vadd.f32 %v1978, %v2193
    %2195 = vdwg.mxu0
    %v2196 = vsel %vm74, %v2050, 0.0
    %v2197 = vsel %vm75, %v2052, 0.0
    %v2198 = vsel %vm76, %v2121, 0.0
    %v2199 = vsel %vm77, %v2123, 0.0
    %v2200 = vsel %vm78, %v2192, 0.0
    %v2201 = vsel %vm79, %v2194, 0.0
    %v2202 = vadd.f32 %v2196, %v804
    %v2203 = vadd.f32 %v2197, %v805
    %v2204 = vadd.f32 %v2198, %v806
    %v2205 = vadd.f32 %v2199, %v807
    %v2206 = vadd.f32 %v2200, %v808
    %v2207 = vadd.f32 %v2201, %v809
    %2208 = vst [vmem:[#allocation8] sm:$0xff] %v2202
    %2209 = vst [vmem:[#allocation8 + $0x8] sm:$0xff] %v2203
    %2210 = vst [vmem:[#allocation8 + $0x10] sm:$0xff] %v2204
    %2211 = vst [vmem:[#allocation8 + $0x18] sm:$0xff] %v2205
    %2212 = vst [vmem:[#allocation8 + $0x20] sm:$0xff] %v2206
    %2213 = vst [vmem:[#allocation8 + $0x28] sm:$0xff] %v2207
    // Predicated region
    $region38: #{tpu_custom_call.1} parent=1 // pred_check
      _
    $region39: #{tpu_custom_call.1} parent=1 // pred_check_branch
      %2215 = sbr.rel (0) target = $region41
    $region40: #{tpu_custom_call.1} parent=1 // pred_region
      %s2217 = ssub.s32 768, 768
      %2218 = vsyncadd [#allocation7], %s2217
      %s2220 = sshll.u32 [#allocation8], 4
      %s2221 = int_to_ptr.vmem [resolvable:$true] %s2220
      %2223 = dma.vmem_to_hbm [thread:$0]  %s2221, 768, %s8, [#allocation7]
    $region41: #{tpu_custom_call.1} parent=1 // pred_fallthru
      _
    // Predicated region
    $region42: #{tpu_custom_call.1} parent=1 // pred_check
      _
    $region43: #{tpu_custom_call.1} parent=1 // pred_check_branch
      %2225 = sbr.rel (0) target = $region45
    $region44: #{tpu_custom_call.1} parent=1 // pred_region
      %2226 = dma.done [#allocation7], 768
    $region45: #{tpu_custom_call.1} parent=1 // pred_fallthru
      _
    %2227 = vsyncpa [#allocation6], 1
    %2228 = vsyncpa [#allocation7], 1

</llo_original>
